<compile_context>
chip_gen: v6e
topology: v6e:2x2x1
jax: 0.10.0
libtpu: 0.0.40
codegen_flags: <defaults>
</compile_context>

<pallas_src>
import jax
import jax.numpy as jnp
from jax.experimental import pallas as pl
from jax.experimental.pallas import tpu as pltpu

NEG_SLOPE = 0.2
LN_EPS = 1e-5


def _round_up(n, m):
    return ((n + m - 1) // m) * m


def _leaky_relu(x):
    # For 0 < slope < 1: max(x, slope*x) == LeakyReLU(x). 2 VALU ops (mul+max).
    return jnp.maximum(x, NEG_SLOPE * x)


def _layer_norm(x, gamma, beta):
    # PyTorch LayerNorm over last dim, biased variance, eps=1e-5.
    # Single-pass statistics: var = E[x^2] - mu^2.
    n = x.shape[-1]
    mu = jnp.sum(x, axis=-1, keepdims=True) * (1.0 / n)
    ex2 = jnp.sum(x * x, axis=-1, keepdims=True) * (1.0 / n)
    var = ex2 - mu * mu
    return (x - mu) * jax.lax.rsqrt(var + LN_EPS) * gamma + beta


def _row_inv_norm_f32(x_f32):
    # 1 / ||x||_2 per row; no eps to match torch (all-zero row -> NaN, same as
    # torch 0/0). rsqrt goes to the EUP slot.
    return jax.lax.rsqrt(jnp.sum(x_f32 * x_f32, axis=-1, keepdims=True))


def domain_classifier_kernel(
    x_ref,
    w1_ref, b1_ref, g1_ref, be1_ref,
    w2_ref, b2_ref, g2_ref, be2_ref,
    w3_ref, b3_ref,
    out_ref,
):
    num_class = out_ref.shape[-1]

    # ---- mlp1: l2_norm folded into matmul epilogue -> LayerNorm -> LeakyReLU
    x = x_ref[...]                                   # bf16 (TM, K), raw MXU operand
    xf = x.astype(jnp.float32)
    inv1 = _row_inv_norm_f32(xf)                     # f32 square-sum accumulation
    h = jnp.dot(x, w1_ref[...], preferred_element_type=jnp.float32)
    h = h * inv1 + b1_ref[...]                       # (x/||x||)@W == (x@W)*inv
    h = _leaky_relu(_layer_norm(h, g1_ref[...], be1_ref[...]))

    # ---- mlp2: l2_norm folded into matmul epilogue -> LayerNorm -> LeakyReLU
    inv2 = _row_inv_norm_f32(h)
    h = jnp.dot(h.astype(jnp.bfloat16), w2_ref[...],
                preferred_element_type=jnp.float32)
    h = h * inv2 + b2_ref[...]
    h = _leaky_relu(_layer_norm(h, g2_ref[...], be2_ref[...]))

    # ---- mlp3: Linear -> logits (MXU runs on 128 padded lanes; only the real
    # num_class columns are stored back to HBM).
    logits = jnp.dot(h.astype(jnp.bfloat16), w3_ref[...],
                     preferred_element_type=jnp.float32) + b3_ref[...]
    out_ref[...] = logits[:, :num_class].astype(out_ref.dtype)


def domain_classifier_forward(x, params, *, tile_m=256):
    """x: (B, input_dim) float32. Returns logits (B, num_class) float32."""
    (w1, b1, g1, be1, w2, b2, g2, be2, w3, b3) = params
    B, D = x.shape
    num_class = w3.shape[1]

    # --- wrapper-side layout padding (numerically inert, zero-padded) ---
    K = _round_up(D, 128)              # MXU contraction tile boundary
    NP = _round_up(num_class, 128)     # lane-padded matmul3 width (VMEM only)

    rows8 = _round_up(B, 8)
    TM = min(tile_m, rows8)
    # Ensure >= 2 grid iterations when there is enough batch, so the
    # ("parallel",) batch axis shards across v7x's 2 TensorCores.
    if rows8 > 8 and rows8 // TM < 2:
        TM = _round_up((rows8 + 1) // 2, 8)
    BP = _round_up(B, TM)

    # Pad K with zeros (does not change row norms / matmul); pad extra batch
    # rows with ones (keeps padded rows finite; they are sliced off anyway).
    # Ship x in bf16: it is the dominant HBM read and the MXU operand anyway.
    x_p = jnp.pad(x, ((0, 0), (0, K - D)))
    x_p = jnp.pad(x_p, ((0, BP - B), (0, 0)), constant_values=1.0)
    x_p = x_p.astype(jnp.bfloat16)

    # bf16 weights for the MXU fast path; biases / LN params stay f32.
    w1_p = jnp.pad(w1, ((0, K - D), (0, 0))).astype(jnp.bfloat16)
    w2_b = w2.astype(jnp.bfloat16)
    w3_p = jnp.pad(w3, ((0, 0), (0, NP - num_class))).astype(jnp.bfloat16)
    b3_p = jnp.pad(b3, ((0, 0), (0, NP - num_class)))

    def const_spec(shape):
        return pl.BlockSpec(shape, lambda i: (0, 0))

    out = pl.pallas_call(
        domain_classifier_kernel,
        # Narrow f32 output: full-last-dim block (tiny masked vst) instead of a
        # 128-lane padded f32 slab -> ~halves HBM bytes for small input_dim.
        out_shape=jax.ShapeDtypeStruct((BP, num_class), jnp.float32),
        grid=(BP // TM,),
        in_specs=[
            pl.BlockSpec((TM, K), lambda i: (i, 0)),      # x tiles, pipelined
            const_spec(w1_p.shape), const_spec(b1.shape),
            const_spec(g1.shape), const_spec(be1.shape),
            const_spec(w2_b.shape), const_spec(b2.shape),
            const_spec(g2.shape), const_spec(be2.shape),
            const_spec(w3_p.shape), const_spec(b3_p.shape),
        ],
        out_specs=pl.BlockSpec((TM, num_class), lambda i: (i, 0)),
        compiler_params=pltpu.CompilerParams(
            dimension_semantics=("parallel",)),
    )(x_p, w1_p, b1, g1, be1, w2_b, b2, g2, be2, w3_p, b3_p)

    return out[:B, :]


def init_params(key, input_dim, num_class=2):
    k1, k2, k3, kb1, kb2, kb3 = jax.random.split(key, 6)
    scale = 0.02
    # Linear weights as (in, out); biases / LN params kept 2D (1, N) so the
    # lane axis is the last dim inside the kernel.
    w1 = scale * jax.random.normal(k1, (input_dim, 512), jnp.float32)
    b1 = scale * jax.random.normal(kb1, (1, 512), jnp.float32)
    g1 = jnp.ones((1, 512), jnp.float32)      # LayerNorm weight (default init)
    be1 = jnp.zeros((1, 512), jnp.float32)    # LayerNorm bias

    w2 = scale * jax.random.normal(k2, (512, 256), jnp.float32)
    b2 = scale * jax.random.normal(kb2, (1, 256), jnp.float32)
    g2 = jnp.ones((1, 256), jnp.float32)
    be2 = jnp.zeros((1, 256), jnp.float32)

    w3 = scale * jax.random.normal(k3, (256, num_class), jnp.float32)
    b3 = scale * jax.random.normal(kb3, (1, num_class), jnp.float32)
    return (w1, b1, g1, be1, w2, b2, g2, be2, w3, b3)


def reference_forward(x, params):
    """Pure-JAX f32 reference mirroring the PyTorch module."""
    (w1, b1, g1, be1, w2, b2, g2, be2, w3, b3) = params

    def l2n(v):
        return v / jnp.sqrt(jnp.sum(v * v, axis=-1, keepdims=True))

    def ln(v, g, b):
        mu = jnp.mean(v, axis=-1, keepdims=True)
        var = jnp.mean((v - mu) ** 2, axis=-1, keepdims=True)
        return (v - mu) / jnp.sqrt(var + LN_EPS) * g + b

    def lrelu(v):
        return jnp.where(v > 0, v, NEG_SLOPE * v)

    h = l2n(x)
    h = lrelu(ln(h @ w1 + b1, g1, be1))
    h = l2n(h)
    h = lrelu(ln(h @ w2 + b2, g2, be2))
    return h @ w3 + b3


if __name__ == "__main__":
    B, input_dim, num_class = 16, 64, 2   # B=16 exercises the 2-tile grid path

    key = jax.random.PRNGKey(0)
    kx, kp = jax.random.split(key)
    x = jax.random.normal(kx, (B, input_dim), jnp.float32)
    params = init_params(kp, input_dim, num_class)

    logits = domain_classifier_forward(x, params)
    logits = jax.block_until_ready(logits)

    ref = reference_forward(x, params)
    assert logits.shape == (B, num_class)
    # bf16 input + bf16 MXU weights with f32 accumulation -> small drift vs f32.
    assert jnp.allclose(logits, ref, atol=3e-2, rtol=3e-2), "mismatch vs reference"

    print("KERNEL_OK")
</pallas_src>

<mosaic_0001>
module attributes {stable_mosaic.version = 11 : i64} {
  func.func @domain_classifier_kernel(%arg0: i32, %arg1: memref<8x128xbf16, #tpu.memory_space<vmem>>, %arg2: memref<128x512xbf16, #tpu.memory_space<vmem>>, %arg3: memref<1x512xf32, #tpu.memory_space<vmem>>, %arg4: memref<1x512xf32, #tpu.memory_space<vmem>>, %arg5: memref<1x512xf32, #tpu.memory_space<vmem>>, %arg6: memref<512x256xbf16, #tpu.memory_space<vmem>>, %arg7: memref<1x256xf32, #tpu.memory_space<vmem>>, %arg8: memref<1x256xf32, #tpu.memory_space<vmem>>, %arg9: memref<1x256xf32, #tpu.memory_space<vmem>>, %arg10: memref<256x128xbf16, #tpu.memory_space<vmem>>, %arg11: memref<1x128xf32, #tpu.memory_space<vmem>>, %arg12: memref<8x2xf32, #tpu.memory_space<vmem>>) attributes {dimension_semantics = [#tpu.dimension_semantics<parallel>], iteration_bounds = array<i64: 2>, scalar_prefetch = 0 : i64, scratch_operands = 0 : i64, tpu.core_type = #tpu.core_type<tc>, window_params = [{transform_indices = @transform_0, window_bounds = array<i64: 8, 128>}, {pipeline_mode = #tpu.pipeline_mode<synchronous>, transform_indices = @transform_1, window_bounds = array<i64: 128, 512>}, {pipeline_mode = #tpu.pipeline_mode<synchronous>, transform_indices = @transform_2, window_bounds = array<i64: 1, 512>}, {pipeline_mode = #tpu.pipeline_mode<synchronous>, transform_indices = @transform_3, window_bounds = array<i64: 1, 512>}, {pipeline_mode = #tpu.pipeline_mode<synchronous>, transform_indices = @transform_4, window_bounds = array<i64: 1, 512>}, {pipeline_mode = #tpu.pipeline_mode<synchronous>, transform_indices = @transform_5, window_bounds = array<i64: 512, 256>}, {pipeline_mode = #tpu.pipeline_mode<synchronous>, transform_indices = @transform_6, window_bounds = array<i64: 1, 256>}, {pipeline_mode = #tpu.pipeline_mode<synchronous>, transform_indices = @transform_7, window_bounds = array<i64: 1, 256>}, {pipeline_mode = #tpu.pipeline_mode<synchronous>, transform_indices = @transform_8, window_bounds = array<i64: 1, 256>}, {pipeline_mode = #tpu.pipeline_mode<synchronous>, transform_indices = @transform_9, window_bounds = array<i64: 256, 128>}, {pipeline_mode = #tpu.pipeline_mode<synchronous>, transform_indices = @transform_10, window_bounds = array<i64: 1, 128>}, {transform_indices = @transform_11, window_bounds = array<i64: 8, 2>}]} {
    %c0 = arith.constant 0 : index
    %c0_0 = arith.constant 0 : index
    %0 = vector.load %arg1[%c0, %c0_0] : memref<8x128xbf16, #tpu.memory_space<vmem>>, vector<8x128xbf16>
    %1 = arith.extf %0 : vector<8x128xbf16> to vector<8x128xf32>
    %2 = arith.mulf %1, %1 : vector<8x128xf32>
    %cst = arith.constant dense<0.000000e+00> : vector<8xf32>
    %3 = vector.multi_reduction <add>, %2, %cst [1] : vector<8x128xf32> to vector<8xf32>
    %4 = vector.shape_cast %3 : vector<8xf32> to vector<8x1xf32>
    %5 = math.rsqrt %4 : vector<8x1xf32>
    %c0_1 = arith.constant 0 : index
    %c0_2 = arith.constant 0 : index
    %6 = vector.load %arg2[%c0_1, %c0_2] : memref<128x512xbf16, #tpu.memory_space<vmem>>, vector<128x512xbf16>
    %cst_3 = arith.constant dense<0.000000e+00> : vector<8x512xf32>
    %7 = tpu.matmul %0, %6, %cst_3 {dimension_numbers = #tpu.dot_dimension_numbers<[1], [0], [0], [1], [0, 0, 1, 1], [], []>} : vector<8x128xbf16>, vector<128x512xbf16>, vector<8x512xf32> -> vector<8x512xf32>
    %8 = vector.broadcast %5 : vector<8x1xf32> to vector<8x512xf32>
    %9 = arith.mulf %7, %8 : vector<8x512xf32>
    %c0_4 = arith.constant 0 : index
    %c0_5 = arith.constant 0 : index
    %10 = vector.load %arg3[%c0_4, %c0_5] : memref<1x512xf32, #tpu.memory_space<vmem>>, vector<1x512xf32>
    %11 = vector.broadcast %10 : vector<1x512xf32> to vector<8x512xf32>
    %12 = arith.addf %9, %11 : vector<8x512xf32>
    %c0_6 = arith.constant 0 : index
    %c0_7 = arith.constant 0 : index
    %13 = vector.load %arg4[%c0_6, %c0_7] : memref<1x512xf32, #tpu.memory_space<vmem>>, vector<1x512xf32>
    %c0_8 = arith.constant 0 : index
    %c0_9 = arith.constant 0 : index
    %14 = vector.load %arg5[%c0_8, %c0_9] : memref<1x512xf32, #tpu.memory_space<vmem>>, vector<1x512xf32>
    %cst_10 = arith.constant dense<0.000000e+00> : vector<8xf32>
    %15 = vector.multi_reduction <add>, %12, %cst_10 [1] : vector<8x512xf32> to vector<8xf32>
    %16 = vector.shape_cast %15 : vector<8xf32> to vector<8x1xf32>
    %cst_11 = arith.constant 0.001953125 : f32
    %17 = vector.broadcast %cst_11 : f32 to vector<8x1xf32>
    %18 = arith.mulf %16, %17 : vector<8x1xf32>
    %19 = arith.mulf %12, %12 : vector<8x512xf32>
    %cst_12 = arith.constant dense<0.000000e+00> : vector<8xf32>
    %20 = vector.multi_reduction <add>, %19, %cst_12 [1] : vector<8x512xf32> to vector<8xf32>
    %21 = vector.shape_cast %20 : vector<8xf32> to vector<8x1xf32>
    %cst_13 = arith.constant 0.001953125 : f32
    %22 = vector.broadcast %cst_13 : f32 to vector<8x1xf32>
    %23 = arith.mulf %21, %22 : vector<8x1xf32>
    %24 = arith.mulf %18, %18 : vector<8x1xf32>
    %25 = arith.subf %23, %24 : vector<8x1xf32>
    %26 = vector.broadcast %18 : vector<8x1xf32> to vector<8x512xf32>
    %27 = arith.subf %12, %26 : vector<8x512xf32>
    %cst_14 = arith.constant 9.99999974E-6 : f32
    %28 = vector.broadcast %cst_14 : f32 to vector<8x1xf32>
    %29 = arith.addf %25, %28 : vector<8x1xf32>
    %30 = math.rsqrt %29 : vector<8x1xf32>
    %31 = vector.broadcast %30 : vector<8x1xf32> to vector<8x512xf32>
    %32 = arith.mulf %27, %31 : vector<8x512xf32>
    %33 = vector.broadcast %13 : vector<1x512xf32> to vector<8x512xf32>
    %34 = arith.mulf %32, %33 : vector<8x512xf32>
    %35 = vector.broadcast %14 : vector<1x512xf32> to vector<8x512xf32>
    %36 = arith.addf %34, %35 : vector<8x512xf32>
    %cst_15 = arith.constant 2.000000e-01 : f32
    %37 = vector.broadcast %cst_15 : f32 to vector<8x512xf32>
    %38 = arith.mulf %37, %36 : vector<8x512xf32>
    %39 = arith.maximumf %36, %38 : vector<8x512xf32>
    %40 = arith.mulf %39, %39 : vector<8x512xf32>
    %cst_16 = arith.constant dense<0.000000e+00> : vector<8xf32>
    %41 = vector.multi_reduction <add>, %40, %cst_16 [1] : vector<8x512xf32> to vector<8xf32>
    %42 = vector.shape_cast %41 : vector<8xf32> to vector<8x1xf32>
    %43 = math.rsqrt %42 : vector<8x1xf32>
    %44 = arith.truncf %39 : vector<8x512xf32> to vector<8x512xbf16>
    %c0_17 = arith.constant 0 : index
    %c0_18 = arith.constant 0 : index
    %45 = vector.load %arg6[%c0_17, %c0_18] : memref<512x256xbf16, #tpu.memory_space<vmem>>, vector<512x256xbf16>
    %cst_19 = arith.constant dense<0.000000e+00> : vector<8x256xf32>
    %46 = tpu.matmul %44, %45, %cst_19 {dimension_numbers = #tpu.dot_dimension_numbers<[1], [0], [0], [1], [0, 0, 1, 1], [], []>} : vector<8x512xbf16>, vector<512x256xbf16>, vector<8x256xf32> -> vector<8x256xf32>
    %47 = vector.broadcast %43 : vector<8x1xf32> to vector<8x256xf32>
    %48 = arith.mulf %46, %47 : vector<8x256xf32>
    %c0_20 = arith.constant 0 : index
    %c0_21 = arith.constant 0 : index
    %49 = vector.load %arg7[%c0_20, %c0_21] : memref<1x256xf32, #tpu.memory_space<vmem>>, vector<1x256xf32>
    %50 = vector.broadcast %49 : vector<1x256xf32> to vector<8x256xf32>
    %51 = arith.addf %48, %50 : vector<8x256xf32>
    %c0_22 = arith.constant 0 : index
    %c0_23 = arith.constant 0 : index
    %52 = vector.load %arg8[%c0_22, %c0_23] : memref<1x256xf32, #tpu.memory_space<vmem>>, vector<1x256xf32>
    %c0_24 = arith.constant 0 : index
    %c0_25 = arith.constant 0 : index
    %53 = vector.load %arg9[%c0_24, %c0_25] : memref<1x256xf32, #tpu.memory_space<vmem>>, vector<1x256xf32>
    %cst_26 = arith.constant dense<0.000000e+00> : vector<8xf32>
    %54 = vector.multi_reduction <add>, %51, %cst_26 [1] : vector<8x256xf32> to vector<8xf32>
    %55 = vector.shape_cast %54 : vector<8xf32> to vector<8x1xf32>
    %cst_27 = arith.constant 3.906250e-03 : f32
    %56 = vector.broadcast %cst_27 : f32 to vector<8x1xf32>
    %57 = arith.mulf %55, %56 : vector<8x1xf32>
    %58 = arith.mulf %51, %51 : vector<8x256xf32>
    %cst_28 = arith.constant dense<0.000000e+00> : vector<8xf32>
    %59 = vector.multi_reduction <add>, %58, %cst_28 [1] : vector<8x256xf32> to vector<8xf32>
    %60 = vector.shape_cast %59 : vector<8xf32> to vector<8x1xf32>
    %cst_29 = arith.constant 3.906250e-03 : f32
    %61 = vector.broadcast %cst_29 : f32 to vector<8x1xf32>
    %62 = arith.mulf %60, %61 : vector<8x1xf32>
    %63 = arith.mulf %57, %57 : vector<8x1xf32>
    %64 = arith.subf %62, %63 : vector<8x1xf32>
    %65 = vector.broadcast %57 : vector<8x1xf32> to vector<8x256xf32>
    %66 = arith.subf %51, %65 : vector<8x256xf32>
    %cst_30 = arith.constant 9.99999974E-6 : f32
    %67 = vector.broadcast %cst_30 : f32 to vector<8x1xf32>
    %68 = arith.addf %64, %67 : vector<8x1xf32>
    %69 = math.rsqrt %68 : vector<8x1xf32>
    %70 = vector.broadcast %69 : vector<8x1xf32> to vector<8x256xf32>
    %71 = arith.mulf %66, %70 : vector<8x256xf32>
    %72 = vector.broadcast %52 : vector<1x256xf32> to vector<8x256xf32>
    %73 = arith.mulf %71, %72 : vector<8x256xf32>
    %74 = vector.broadcast %53 : vector<1x256xf32> to vector<8x256xf32>
    %75 = arith.addf %73, %74 : vector<8x256xf32>
    %cst_31 = arith.constant 2.000000e-01 : f32
    %76 = vector.broadcast %cst_31 : f32 to vector<8x256xf32>
    %77 = arith.mulf %76, %75 : vector<8x256xf32>
    %78 = arith.maximumf %75, %77 : vector<8x256xf32>
    %79 = arith.truncf %78 : vector<8x256xf32> to vector<8x256xbf16>
    %c0_32 = arith.constant 0 : index
    %c0_33 = arith.constant 0 : index
    %80 = vector.load %arg10[%c0_32, %c0_33] : memref<256x128xbf16, #tpu.memory_space<vmem>>, vector<256x128xbf16>
    %cst_34 = arith.constant dense<0.000000e+00> : vector<8x128xf32>
    %81 = tpu.matmul %79, %80, %cst_34 {dimension_numbers = #tpu.dot_dimension_numbers<[1], [0], [0], [1], [0, 0, 1, 1], [], []>} : vector<8x256xbf16>, vector<256x128xbf16>, vector<8x128xf32> -> vector<8x128xf32>
    %c0_35 = arith.constant 0 : index
    %c0_36 = arith.constant 0 : index
    %82 = vector.load %arg11[%c0_35, %c0_36] : memref<1x128xf32, #tpu.memory_space<vmem>>, vector<1x128xf32>
    %83 = vector.broadcast %82 : vector<1x128xf32> to vector<8x128xf32>
    %84 = arith.addf %81, %83 : vector<8x128xf32>
    %85 = vector.extract_strided_slice %84 {offsets = [0, 0], sizes = [8, 2], strides = [1, 1]} : vector<8x128xf32> to vector<8x2xf32>
    %c0_37 = arith.constant 0 : index
    %c0_38 = arith.constant 0 : index
    %86 = vector.load %arg12[%c0_37, %c0_38] : memref<8x2xf32, #tpu.memory_space<vmem>>, vector<8x2xf32>
    tpu.vector_store %arg12[%c0_37, %c0_38], %85 {strides = array<i32>} : memref<8x2xf32, #tpu.memory_space<vmem>>, vector<8x2xf32>,
    return
  }
  func.func @transform_0(%arg0: i32) -> (i32, i32) {
    %c0_i32 = arith.constant 0 : i32
    %c0_i32_0 = arith.constant 0 : i32
    return %arg0, %c0_i32 : i32, i32
  }
  func.func @transform_1(%arg0: i32) -> (i32, i32) {
    %c0_i32 = arith.constant 0 : i32
    %c0_i32_0 = arith.constant 0 : i32
    %c0_i32_1 = arith.constant 0 : i32
    return %c0_i32, %c0_i32_0 : i32, i32
  }
  func.func @transform_2(%arg0: i32) -> (i32, i32) {
    %c0_i32 = arith.constant 0 : i32
    %c0_i32_0 = arith.constant 0 : i32
    %c0_i32_1 = arith.constant 0 : i32
    return %c0_i32, %c0_i32_0 : i32, i32
  }
  func.func @transform_3(%arg0: i32) -> (i32, i32) {
    %c0_i32 = arith.constant 0 : i32
    %c0_i32_0 = arith.constant 0 : i32
    %c0_i32_1 = arith.constant 0 : i32
    return %c0_i32, %c0_i32_0 : i32, i32
  }
  func.func @transform_4(%arg0: i32) -> (i32, i32) {
    %c0_i32 = arith.constant 0 : i32
    %c0_i32_0 = arith.constant 0 : i32
    %c0_i32_1 = arith.constant 0 : i32
    return %c0_i32, %c0_i32_0 : i32, i32
  }
  func.func @transform_5(%arg0: i32) -> (i32, i32) {
    %c0_i32 = arith.constant 0 : i32
    %c0_i32_0 = arith.constant 0 : i32
    %c0_i32_1 = arith.constant 0 : i32
    return %c0_i32, %c0_i32_0 : i32, i32
  }
  func.func @transform_6(%arg0: i32) -> (i32, i32) {
    %c0_i32 = arith.constant 0 : i32
    %c0_i32_0 = arith.constant 0 : i32
    %c0_i32_1 = arith.constant 0 : i32
    return %c0_i32, %c0_i32_0 : i32, i32
  }
  func.func @transform_7(%arg0: i32) -> (i32, i32) {
    %c0_i32 = arith.constant 0 : i32
    %c0_i32_0 = arith.constant 0 : i32
    %c0_i32_1 = arith.constant 0 : i32
    return %c0_i32, %c0_i32_0 : i32, i32
  }
  func.func @transform_8(%arg0: i32) -> (i32, i32) {
    %c0_i32 = arith.constant 0 : i32
    %c0_i32_0 = arith.constant 0 : i32
    %c0_i32_1 = arith.constant 0 : i32
    return %c0_i32, %c0_i32_0 : i32, i32
  }
  func.func @transform_9(%arg0: i32) -> (i32, i32) {
    %c0_i32 = arith.constant 0 : i32
    %c0_i32_0 = arith.constant 0 : i32
    %c0_i32_1 = arith.constant 0 : i32
    return %c0_i32, %c0_i32_0 : i32, i32
  }
  func.func @transform_10(%arg0: i32) -> (i32, i32) {
    %c0_i32 = arith.constant 0 : i32
    %c0_i32_0 = arith.constant 0 : i32
    %c0_i32_1 = arith.constant 0 : i32
    return %c0_i32, %c0_i32_0 : i32, i32
  }
  func.func @transform_11(%arg0: i32) -> (i32, i32) {
    %c0_i32 = arith.constant 0 : i32
    %c0_i32_0 = arith.constant 0 : i32
    return %arg0, %c0_i32 : i32, i32
  }
}

</mosaic_0001>

<llo_original>
// kernel: tpu_custom_call.1
$region0: #{tpu_custom_call.1}
  #allocation0 [shape = 'u32[]', space=smem, size = 0x4, offset = 0x4, fixed_abs, tag = 'smem constant byte address 0x4 - core index']
  #allocation1 [shape = 'u32[144,128]{1,0:T(1,128)}', space=vmem, size = 0x12000, scoped, tag = 'internal scratch']
  %s0 = inlined_call_operand.hbm [shape: bf16[16,128], index: 0, kind: input, shape index: {}]
  %s1 = inlined_call_operand.hbm [shape: bf16[128,512], index: 1, kind: input, shape index: {}]
  %s2 = inlined_call_operand.hbm [shape: f32[1,512], index: 2, kind: input, shape index: {}]
  %s3 = inlined_call_operand.vmem [shape: f32[1,512], index: 3, kind: input, shape index: {}]
  %s4 = inlined_call_operand.hbm [shape: f32[1,512], index: 4, kind: input, shape index: {}]
  %s5 = inlined_call_operand.hbm [shape: bf16[512,256], index: 5, kind: input, shape index: {}]
  %s6 = inlined_call_operand.vmem [shape: f32[1,256], index: 6, kind: input, shape index: {}]
  %s7 = inlined_call_operand.vmem [shape: f32[1,256], index: 7, kind: input, shape index: {}]
  %s8 = inlined_call_operand.vmem [shape: f32[1,256], index: 8, kind: input, shape index: {}]
  %s9 = inlined_call_operand.hbm [shape: bf16[256,128], index: 9, kind: input, shape index: {}]
  %s10 = inlined_call_operand.vmem [shape: f32[1,128], index: 10, kind: input, shape index: {}]
  %s11 = inlined_call_operand.vmem [shape: f32[16,2], index: 11, kind: output, shape index: {}]
  %s12 = sld [smem:[#allocation0]]
  $region101: #{tpu_custom_call.1} parent=0
    _
  %s14 = ssub.s32 1, %s12
  %s15 = scalar_select 0, %s14, %s12
  $region1: #{tpu_custom_call.1} parent=0
    #allocation2 [shape = 'u8[4096]{0}', space=vmem, size = 0x1000, scoped, tag = 'input window, operand 0']
    #allocation3 [shape = 's32[2]{0}', space=sflag, size = 0x8, scoped, tag = 'scoped memory for tpu_custom_call.1']
    #allocation4 [shape = 'u8[131072]{0}', space=vmem, size = 0x20000, scoped, tag = 'input window, operand 1, single buffered']
    #allocation5 [shape = 's32[1]{0}', space=sflag, size = 0x4, scoped, tag = 'scoped memory for tpu_custom_call.1']
    #allocation6 [shape = 'u8[2048]{0}', space=vmem, size = 0x800, scoped, tag = 'input window, operand 2, single buffered']
    #allocation7 [shape = 'u8[2048]{0}', space=vmem, size = 0x800, scoped, tag = 'input window, operand 4, single buffered']
    #allocation8 [shape = 's32[1]{0}', space=sflag, size = 0x4, scoped, tag = 'scoped memory for tpu_custom_call.1']
    #allocation9 [shape = 'u8[262144]{0}', space=vmem, size = 0x40000, scoped, tag = 'input window, operand 5, single buffered']
    #allocation10 [shape = 'u8[65536]{0}', space=vmem, size = 0x10000, scoped, tag = 'input window, operand 9, single buffered']
    #allocation11 [shape = 's32[1]{0}', space=sflag, size = 0x4, scoped, tag = 'scoped memory for tpu_custom_call.1']
    %16 = vsyncpa [#allocation3], 0
    %s17 = scalar_lea.sflag [#allocation3], 1
    %18 = vsyncpa %s17, 0
    %19 = vsyncpa [#allocation5], 0
    %20 = vsyncpa [#allocation8], 0
    %21 = vsyncpa [#allocation11], 0
    loop: start=0, step=1, limit=4
    $region2: #{tpu_custom_call.1} parent=1 // loop_pre_header
      _
    $region3: #{tpu_custom_call.1} parent=1 // loop_header
      %s23 = sphi 0, %s27
      %p24 = scmp.ge.s32.totalorder %s23, 4
      %s33 = sphi 0, %s35
      %s36 = sphi 0, %s33
      %s37 = sphi 0, %s36
      %s53 = sphi 0, %s37
      %s57 = sphi 0, %s57
      %s59 = sphi 0, %s57
      %s60 = sphi 0, %s59
      %s74 = sphi 0, %s60
      %s78 = sphi 0, %s78
      %s80 = sphi 0, %s78
      %s81 = sphi 0, %s80
      %s95 = sphi 0, %s81
      %s99 = sphi 0, %s99
      %s101 = sphi 0, %s99
      %s102 = sphi 0, %s101
      %s116 = sphi 0, %s102
      %s120 = sphi 0, %s120
      %s122 = sphi 0, %s120
      %s123 = sphi 0, %s122
      %s137 = sphi 0, %s123
      %s141 = sphi 0, %s141
      %s143 = sphi 0, %s141
      %s144 = sphi 0, %s143
      %s158 = sphi 0, %s144
      %s162 = sphi 0, %s162
      %s164 = sphi 0, %s162
      %s165 = sphi 0, %s164
      %s179 = sphi 0, %s165
      %s183 = sphi 0, %s183
      %s185 = sphi 0, %s183
      %s186 = sphi 0, %s185
      %s200 = sphi 0, %s186
      %s204 = sphi 0, %s204
      %s206 = sphi 0, %s204
      %s207 = sphi 0, %s206
      %s221 = sphi 0, %s207
      %s225 = sphi 0, %s225
      %s227 = sphi 0, %s225
      %s228 = sphi 0, %s227
      %s242 = sphi 0, %s228
      %s246 = sphi 0, %s246
      %s248 = sphi 0, %s246
      %s249 = sphi 0, %s248
      %s263 = sphi 0, %s249
      %s269 = sphi 0, %s271
      %s272 = sphi 0, %s269
      %s273 = sphi 0, %s272
      %s289 = sphi 0, %s273
    $region4: #{tpu_custom_call.1} parent=1 // loop_header_branch
      %26 = sbr.rel (%p24) target = $region8
    $region5: #{tpu_custom_call.1} parent=1 // loop_body
      %s28 = ssub.s32 %s23, 1
      %s29 = ssub.s32 %s23, 2
      %s30 = sadd.s32 %s23, 1
      %s31 = ssub.s32 %s23, %s30
      %p32 = scmp.eq.s32.totalorder %s31, 0
      %s34 = sadd.s32 %s33, 1
      %s35 = scalar_select %p32, %s33, %s34
      %p38 = pneg %p32
      %p39 = scmp.eq.s32.totalorder %s23, 1
      %p40 = por %p38, %p39
      %p41 = scmp.ne.s32.totalorder %s33, %s36
      %p42 = scmp.eq.s32.totalorder %s23, 0
      %p43 = por %p41, %p42
      %p44 = scmp.ne.s32.totalorder %s33, %s36
      %p45 = scmp.eq.s32.totalorder %s28, 1
      %p46 = por %p44, %p45
      %p47 = scmp.ne.s32.totalorder %s36, %s37
      %p48 = scmp.eq.s32.totalorder %s28, 0
      %p49 = por %p47, %p48
      %p50 = scmp.ne.s32.totalorder %s36, %s37
      %p51 = scmp.eq.s32.totalorder %s29, 1
      %p52 = por %p50, %p51
      %p54 = scmp.ne.s32.totalorder %s37, %s53
      %p55 = scmp.eq.s32.totalorder %s29, 0
      %p56 = por %p54, %p55
      %s58 = sadd.s32 %s57, 1
      %p61 = scmp.eq.s32.totalorder %s23, 1
      %p62 = scmp.ne.s32.totalorder %s57, %s59
      %p63 = scmp.eq.s32.totalorder %s23, 0
      %p64 = por %p62, %p63
      %p65 = scmp.ne.s32.totalorder %s57, %s59
      %p66 = scmp.eq.s32.totalorder %s28, 1
      %p67 = por %p65, %p66
      %p68 = scmp.ne.s32.totalorder %s59, %s60
      %p69 = scmp.eq.s32.totalorder %s28, 0
      %p70 = por %p68, %p69
      %p71 = scmp.ne.s32.totalorder %s59, %s60
      %p72 = scmp.eq.s32.totalorder %s29, 1
      %p73 = por %p71, %p72
      %p75 = scmp.ne.s32.totalorder %s60, %s74
      %p76 = scmp.eq.s32.totalorder %s29, 0
      %p77 = por %p75, %p76
      %s79 = sadd.s32 %s78, 1
      %p82 = scmp.eq.s32.totalorder %s23, 1
      %p83 = scmp.ne.s32.totalorder %s78, %s80
      %p84 = scmp.eq.s32.totalorder %s23, 0
      %p85 = por %p83, %p84
      %p86 = scmp.ne.s32.totalorder %s78, %s80
      %p87 = scmp.eq.s32.totalorder %s28, 1
      %p88 = por %p86, %p87
      %p89 = scmp.ne.s32.totalorder %s80, %s81
      %p90 = scmp.eq.s32.totalorder %s28, 0
      %p91 = por %p89, %p90
      %p92 = scmp.ne.s32.totalorder %s80, %s81
      %p93 = scmp.eq.s32.totalorder %s29, 1
      %p94 = por %p92, %p93
      %p96 = scmp.ne.s32.totalorder %s81, %s95
      %p97 = scmp.eq.s32.totalorder %s29, 0
      %p98 = por %p96, %p97
      %s100 = sadd.s32 %s99, 1
      %p103 = scmp.eq.s32.totalorder %s23, 1
      %p104 = scmp.ne.s32.totalorder %s99, %s101
      %p105 = scmp.eq.s32.totalorder %s23, 0
      %p106 = por %p104, %p105
      %p107 = scmp.ne.s32.totalorder %s99, %s101
      %p108 = scmp.eq.s32.totalorder %s28, 1
      %p109 = por %p107, %p108
      %p110 = scmp.ne.s32.totalorder %s101, %s102
      %p111 = scmp.eq.s32.totalorder %s28, 0
      %p112 = por %p110, %p111
      %p113 = scmp.ne.s32.totalorder %s101, %s102
      %p114 = scmp.eq.s32.totalorder %s29, 1
      %p115 = por %p113, %p114
      %p117 = scmp.ne.s32.totalorder %s102, %s116
      %p118 = scmp.eq.s32.totalorder %s29, 0
      %p119 = por %p117, %p118
      %s121 = sadd.s32 %s120, 1
      %p124 = scmp.eq.s32.totalorder %s23, 1
      %p125 = scmp.ne.s32.totalorder %s120, %s122
      %p126 = scmp.eq.s32.totalorder %s23, 0
      %p127 = por %p125, %p126
      %p128 = scmp.ne.s32.totalorder %s120, %s122
      %p129 = scmp.eq.s32.totalorder %s28, 1
      %p130 = por %p128, %p129
      %p131 = scmp.ne.s32.totalorder %s122, %s123
      %p132 = scmp.eq.s32.totalorder %s28, 0
      %p133 = por %p131, %p132
      %p134 = scmp.ne.s32.totalorder %s122, %s123
      %p135 = scmp.eq.s32.totalorder %s29, 1
      %p136 = por %p134, %p135
      %p138 = scmp.ne.s32.totalorder %s123, %s137
      %p139 = scmp.eq.s32.totalorder %s29, 0
      %p140 = por %p138, %p139
      %s142 = sadd.s32 %s141, 1
      %p145 = scmp.eq.s32.totalorder %s23, 1
      %p146 = scmp.ne.s32.totalorder %s141, %s143
      %p147 = scmp.eq.s32.totalorder %s23, 0
      %p148 = por %p146, %p147
      %p149 = scmp.ne.s32.totalorder %s141, %s143
      %p150 = scmp.eq.s32.totalorder %s28, 1
      %p151 = por %p149, %p150
      %p152 = scmp.ne.s32.totalorder %s143, %s144
      %p153 = scmp.eq.s32.totalorder %s28, 0
      %p154 = por %p152, %p153
      %p155 = scmp.ne.s32.totalorder %s143, %s144
      %p156 = scmp.eq.s32.totalorder %s29, 1
      %p157 = por %p155, %p156
      %p159 = scmp.ne.s32.totalorder %s144, %s158
      %p160 = scmp.eq.s32.totalorder %s29, 0
      %p161 = por %p159, %p160
      %s163 = sadd.s32 %s162, 1
      %p166 = scmp.eq.s32.totalorder %s23, 1
      %p167 = scmp.ne.s32.totalorder %s162, %s164
      %p168 = scmp.eq.s32.totalorder %s23, 0
      %p169 = por %p167, %p168
      %p170 = scmp.ne.s32.totalorder %s162, %s164
      %p171 = scmp.eq.s32.totalorder %s28, 1
      %p172 = por %p170, %p171
      %p173 = scmp.ne.s32.totalorder %s164, %s165
      %p174 = scmp.eq.s32.totalorder %s28, 0
      %p175 = por %p173, %p174
      %p176 = scmp.ne.s32.totalorder %s164, %s165
      %p177 = scmp.eq.s32.totalorder %s29, 1
      %p178 = por %p176, %p177
      %p180 = scmp.ne.s32.totalorder %s165, %s179
      %p181 = scmp.eq.s32.totalorder %s29, 0
      %p182 = por %p180, %p181
      %s184 = sadd.s32 %s183, 1
      %p187 = scmp.eq.s32.totalorder %s23, 1
      %p188 = scmp.ne.s32.totalorder %s183, %s185
      %p189 = scmp.eq.s32.totalorder %s23, 0
      %p190 = por %p188, %p189
      %p191 = scmp.ne.s32.totalorder %s183, %s185
      %p192 = scmp.eq.s32.totalorder %s28, 1
      %p193 = por %p191, %p192
      %p194 = scmp.ne.s32.totalorder %s185, %s186
      %p195 = scmp.eq.s32.totalorder %s28, 0
      %p196 = por %p194, %p195
      %p197 = scmp.ne.s32.totalorder %s185, %s186
      %p198 = scmp.eq.s32.totalorder %s29, 1
      %p199 = por %p197, %p198
      %p201 = scmp.ne.s32.totalorder %s186, %s200
      %p202 = scmp.eq.s32.totalorder %s29, 0
      %p203 = por %p201, %p202
      %s205 = sadd.s32 %s204, 1
      %p208 = scmp.eq.s32.totalorder %s23, 1
      %p209 = scmp.ne.s32.totalorder %s204, %s206
      %p210 = scmp.eq.s32.totalorder %s23, 0
      %p211 = por %p209, %p210
      %p212 = scmp.ne.s32.totalorder %s204, %s206
      %p213 = scmp.eq.s32.totalorder %s28, 1
      %p214 = por %p212, %p213
      %p215 = scmp.ne.s32.totalorder %s206, %s207
      %p216 = scmp.eq.s32.totalorder %s28, 0
      %p217 = por %p215, %p216
      %p218 = scmp.ne.s32.totalorder %s206, %s207
      %p219 = scmp.eq.s32.totalorder %s29, 1
      %p220 = por %p218, %p219
      %p222 = scmp.ne.s32.totalorder %s207, %s221
      %p223 = scmp.eq.s32.totalorder %s29, 0
      %p224 = por %p222, %p223
      %s226 = sadd.s32 %s225, 1
      %p229 = scmp.eq.s32.totalorder %s23, 1
      %p230 = scmp.ne.s32.totalorder %s225, %s227
      %p231 = scmp.eq.s32.totalorder %s23, 0
      %p232 = por %p230, %p231
      %p233 = scmp.ne.s32.totalorder %s225, %s227
      %p234 = scmp.eq.s32.totalorder %s28, 1
      %p235 = por %p233, %p234
      %p236 = scmp.ne.s32.totalorder %s227, %s228
      %p237 = scmp.eq.s32.totalorder %s28, 0
      %p238 = por %p236, %p237
      %p239 = scmp.ne.s32.totalorder %s227, %s228
      %p240 = scmp.eq.s32.totalorder %s29, 1
      %p241 = por %p239, %p240
      %p243 = scmp.ne.s32.totalorder %s228, %s242
      %p244 = scmp.eq.s32.totalorder %s29, 0
      %p245 = por %p243, %p244
      %s247 = sadd.s32 %s246, 1
      %p250 = scmp.eq.s32.totalorder %s23, 1
      %p251 = scmp.ne.s32.totalorder %s246, %s248
      %p252 = scmp.eq.s32.totalorder %s23, 0
      %p253 = por %p251, %p252
      %p254 = scmp.ne.s32.totalorder %s246, %s248
      %p255 = scmp.eq.s32.totalorder %s28, 1
      %p256 = por %p254, %p255
      %p257 = scmp.ne.s32.totalorder %s248, %s249
      %p258 = scmp.eq.s32.totalorder %s28, 0
      %p259 = por %p257, %p258
      %p260 = scmp.ne.s32.totalorder %s248, %s249
      %p261 = scmp.eq.s32.totalorder %s29, 1
      %p262 = por %p260, %p261
      %p264 = scmp.ne.s32.totalorder %s249, %s263
      %p265 = scmp.eq.s32.totalorder %s29, 0
      %p266 = por %p264, %p265
      %s267 = ssub.s32 %s23, %s30
      %p268 = scmp.eq.s32.totalorder %s267, 0
      %s270 = sadd.s32 %s269, 1
      %s271 = scalar_select %p268, %s269, %s270
      %p274 = pneg %p268
      %p275 = scmp.eq.s32.totalorder %s23, 1
      %p276 = por %p274, %p275
      %p277 = scmp.ne.s32.totalorder %s269, %s272
      %p278 = scmp.eq.s32.totalorder %s23, 0
      %p279 = por %p277, %p278
      %p280 = scmp.ne.s32.totalorder %s269, %s272
      %p281 = scmp.eq.s32.totalorder %s28, 1
      %p282 = por %p280, %p281
      %p283 = scmp.ne.s32.totalorder %s272, %s273
      %p284 = scmp.eq.s32.totalorder %s28, 0
      %p285 = por %p283, %p284
      %p286 = scmp.ne.s32.totalorder %s272, %s273
      %p287 = scmp.eq.s32.totalorder %s29, 1
      %p288 = por %p286, %p287
      %p290 = scmp.ne.s32.totalorder %s273, %s289
      %p291 = scmp.eq.s32.totalorder %s29, 0
      %p292 = por %p290, %p291
      %p293 = scmp.le.s32.totalorder 1, %s23
      %p294 = scmp.lt.s32.totalorder %s23, 3
      %p295 = pnand %p293, %p294
      %p296 = pneg %p295
      // Predicated region
      $region9: #{tpu_custom_call.1} parent=5 // pred_check
        _
      $region10: #{tpu_custom_call.1} parent=5 // pred_check_branch
        %298 = sbr.rel (%p295) target = $region12
      $region11: #{tpu_custom_call.1} parent=5 // pred_region
        %s299 = ssub.s32 %s23, 1
        // Predicated region
        $region13: #{tpu_custom_call.1} parent=11 // pred_check
          %p300 = pneg %p70
        $region14: #{tpu_custom_call.1} parent=11 // pred_check_branch
          %302 = sbr.rel (%p300) target = $region16
        $region15: #{tpu_custom_call.1} parent=11 // pred_region
          %s304 = ssub.s32 4096, 4096
          %305 = vsyncadd [#allocation5], %s304
          %s306 = sshll.u32 [#allocation4], 4
          %s307 = int_to_ptr.vmem [resolvable:$true] %s306
          %312 = dma.hbm_to_vmem [thread:$0]  %s1, 4096, %s307, [#allocation5], 256, 256, 16
        $region16: #{tpu_custom_call.1} parent=11 // pred_fallthru
          _
        // Predicated region
        $region17: #{tpu_custom_call.1} parent=11 // pred_check
          %p313 = pneg %p91
        $region18: #{tpu_custom_call.1} parent=11 // pred_check_branch
          %315 = sbr.rel (%p313) target = $region20
        $region19: #{tpu_custom_call.1} parent=11 // pred_region
          %s317 = ssub.s32 64, 64
          %318 = vsyncadd [#allocation5], %s317
          %s320 = sshll.u32 [#allocation6], 4
          %s321 = int_to_ptr.vmem [resolvable:$true] %s320
          %323 = dma.hbm_to_vmem [thread:$0]  %s2, 64, %s321, [#allocation5]
        $region20: #{tpu_custom_call.1} parent=11 // pred_fallthru
          _
        // Predicated region
        $region21: #{tpu_custom_call.1} parent=11 // pred_check
          %p324 = pneg %p112
        $region22: #{tpu_custom_call.1} parent=11 // pred_check_branch
          %326 = sbr.rel (%p324) target = $region24
        $region23: #{tpu_custom_call.1} parent=11 // pred_region
          _
        $region24: #{tpu_custom_call.1} parent=11 // pred_fallthru
          _
        // Predicated region
        $region25: #{tpu_custom_call.1} parent=11 // pred_check
          %p327 = pneg %p133
        $region26: #{tpu_custom_call.1} parent=11 // pred_check_branch
          %329 = sbr.rel (%p327) target = $region28
        $region27: #{tpu_custom_call.1} parent=11 // pred_region
          %s331 = ssub.s32 64, 64
          %332 = vsyncadd [#allocation8], %s331
          %s334 = sshll.u32 [#allocation7], 4
          %s335 = int_to_ptr.vmem [resolvable:$true] %s334
          %337 = dma.hbm_to_vmem [thread:$0]  %s4, 64, %s335, [#allocation8]
        $region28: #{tpu_custom_call.1} parent=11 // pred_fallthru
          _
        // Predicated region
        $region29: #{tpu_custom_call.1} parent=11 // pred_check
          %p338 = pneg %p154
        $region30: #{tpu_custom_call.1} parent=11 // pred_check_branch
          %340 = sbr.rel (%p338) target = $region32
        $region31: #{tpu_custom_call.1} parent=11 // pred_region
          %s342 = ssub.s32 8192, 8192
          %343 = vsyncadd [#allocation8], %s342
          %s344 = sshll.u32 [#allocation9], 4
          %s345 = int_to_ptr.vmem [resolvable:$true] %s344
          %350 = dma.hbm_to_vmem [thread:$0]  %s5, 8192, %s345, [#allocation8], 128, 128, 8
        $region32: #{tpu_custom_call.1} parent=11 // pred_fallthru
          _
        // Predicated region
        $region33: #{tpu_custom_call.1} parent=11 // pred_check
          %p351 = pneg %p175
        $region34: #{tpu_custom_call.1} parent=11 // pred_check_branch
          %353 = sbr.rel (%p351) target = $region36
        $region35: #{tpu_custom_call.1} parent=11 // pred_region
          _
        $region36: #{tpu_custom_call.1} parent=11 // pred_fallthru
          _
        // Predicated region
        $region37: #{tpu_custom_call.1} parent=11 // pred_check
          %p354 = pneg %p196
        $region38: #{tpu_custom_call.1} parent=11 // pred_check_branch
          %356 = sbr.rel (%p354) target = $region40
        $region39: #{tpu_custom_call.1} parent=11 // pred_region
          _
        $region40: #{tpu_custom_call.1} parent=11 // pred_fallthru
          _
        // Predicated region
        $region41: #{tpu_custom_call.1} parent=11 // pred_check
          %p357 = pneg %p217
        $region42: #{tpu_custom_call.1} parent=11 // pred_check_branch
          %359 = sbr.rel (%p357) target = $region44
        $region43: #{tpu_custom_call.1} parent=11 // pred_region
          _
        $region44: #{tpu_custom_call.1} parent=11 // pred_fallthru
          _
        // Predicated region
        $region45: #{tpu_custom_call.1} parent=11 // pred_check
          %p360 = pneg %p238
        $region46: #{tpu_custom_call.1} parent=11 // pred_check_branch
          %362 = sbr.rel (%p360) target = $region48
        $region47: #{tpu_custom_call.1} parent=11 // pred_region
          %s364 = ssub.s32 2048, 2048
          %365 = vsyncadd [#allocation11], %s364
          %s366 = sshll.u32 [#allocation10], 4
          %s367 = int_to_ptr.vmem [resolvable:$true] %s366
          %372 = dma.hbm_to_vmem [thread:$0]  %s9, 2048, %s367, [#allocation11], 64, 64, 4
        $region48: #{tpu_custom_call.1} parent=11 // pred_fallthru
          _
        // Predicated region
        $region49: #{tpu_custom_call.1} parent=11 // pred_check
          %p373 = pneg %p259
        $region50: #{tpu_custom_call.1} parent=11 // pred_check_branch
          %375 = sbr.rel (%p373) target = $region52
        $region51: #{tpu_custom_call.1} parent=11 // pred_region
          _
        $region52: #{tpu_custom_call.1} parent=11 // pred_fallthru
          _
      $region12: #{tpu_custom_call.1} parent=5 // pred_fallthru
        _
      %p376 = scmp.lt.s32.totalorder %s23, 2
      // Predicated region
      $region53: #{tpu_custom_call.1} parent=5 // pred_check
        %p377 = pneg %p376
      $region54: #{tpu_custom_call.1} parent=5 // pred_check_branch
        %379 = sbr.rel (%p377) target = $region56
      $region55: #{tpu_custom_call.1} parent=5 // pred_region
        // Predicated region
        $region57: #{tpu_custom_call.1} parent=55 // pred_check
          %p380 = pneg %p43
        $region58: #{tpu_custom_call.1} parent=55 // pred_check_branch
          %382 = sbr.rel (%p380) target = $region60
        $region59: #{tpu_custom_call.1} parent=55 // pred_region
          %s383 = sand.u32 %s33, 1
          %s384 = scalar_lea.sflag [#allocation3], %s383
          %s385 = sand.u32 %s33, 1
          %s386 = smul.addr %s385, 4
          %s387 = scalar_lea.vmem [#allocation2], %s386
          %s389 = ssub.s32 64, 64
          %390 = vsyncadd %s384, %s389
          %s391 = smul.addr %s23, 64
          %s392 = scalar_lea.hbm %s0, %s391
          %s394 = sshll.u32 %s387, 4
          %s395 = int_to_ptr.vmem [resolvable:$true] %s394
          %397 = dma.hbm_to_vmem [thread:$0]  %s392, 64, %s395, %s384
        $region60: #{tpu_custom_call.1} parent=55 // pred_fallthru
          _
      $region56: #{tpu_custom_call.1} parent=5 // pred_fallthru
        _
      %p398 = scmp.le.s32.totalorder 1, %s23
      %p399 = scmp.lt.s32.totalorder %s23, 3
      %p400 = pnand %p398, %p399
      %p401 = pneg %p400
      // Predicated region
      $region61: #{tpu_custom_call.1} parent=5 // pred_check
        _
      $region62: #{tpu_custom_call.1} parent=5 // pred_check_branch
        %403 = sbr.rel (%p400) target = $region64
      $region63: #{tpu_custom_call.1} parent=5 // pred_region
        %s404 = ssub.s32 %s23, 1
        %s405 = sand.u32 %s36, 1
        %s406 = scalar_lea.sflag [#allocation3], %s405
        %s407 = sand.u32 %s36, 1
        %s408 = smul.addr %s407, 4
        %s409 = scalar_lea.vmem [#allocation2], %s408
        // Predicated region
        $region65: #{tpu_custom_call.1} parent=63 // pred_check
          %p410 = pneg %p49
        $region66: #{tpu_custom_call.1} parent=63 // pred_check_branch
          %412 = sbr.rel (%p410) target = $region68
        $region67: #{tpu_custom_call.1} parent=63 // pred_region
          %413 = dma.done %s406, 64
        $region68: #{tpu_custom_call.1} parent=63 // pred_fallthru
          _
        // Predicated region
        $region69: #{tpu_custom_call.1} parent=63 // pred_check
          %p414 = pneg %p70
        $region70: #{tpu_custom_call.1} parent=63 // pred_check_branch
          %416 = sbr.rel (%p414) target = $region72
        $region71: #{tpu_custom_call.1} parent=63 // pred_region
          %417 = dma.done [#allocation5], 4096
        $region72: #{tpu_custom_call.1} parent=63 // pred_fallthru
          _
        // Predicated region
        $region73: #{tpu_custom_call.1} parent=63 // pred_check
          %p418 = pneg %p91
        $region74: #{tpu_custom_call.1} parent=63 // pred_check_branch
          %420 = sbr.rel (%p418) target = $region76
        $region75: #{tpu_custom_call.1} parent=63 // pred_region
          %421 = dma.done [#allocation5], 64
        $region76: #{tpu_custom_call.1} parent=63 // pred_fallthru
          _
        // Predicated region
        $region77: #{tpu_custom_call.1} parent=63 // pred_check
          %p422 = pneg %p133
        $region78: #{tpu_custom_call.1} parent=63 // pred_check_branch
          %424 = sbr.rel (%p422) target = $region80
        $region79: #{tpu_custom_call.1} parent=63 // pred_region
          %425 = dma.done [#allocation8], 64
        $region80: #{tpu_custom_call.1} parent=63 // pred_fallthru
          _
        // Predicated region
        $region81: #{tpu_custom_call.1} parent=63 // pred_check
          %p426 = pneg %p154
        $region82: #{tpu_custom_call.1} parent=63 // pred_check_branch
          %428 = sbr.rel (%p426) target = $region84
        $region83: #{tpu_custom_call.1} parent=63 // pred_region
          %429 = dma.done [#allocation8], 8192
        $region84: #{tpu_custom_call.1} parent=63 // pred_fallthru
          _
        // Predicated region
        $region85: #{tpu_custom_call.1} parent=63 // pred_check
          %p430 = pneg %p238
        $region86: #{tpu_custom_call.1} parent=63 // pred_check_branch
          %432 = sbr.rel (%p430) target = $region88
        $region87: #{tpu_custom_call.1} parent=63 // pred_region
          %433 = dma.done [#allocation11], 2048
        $region88: #{tpu_custom_call.1} parent=63 // pred_fallthru
          _
        %s434 = sand.u32 %s36, 1
        %s435 = scalar_lea.sflag [#allocation3], %s434
        %s436 = sand.u32 %s36, 1
        %s437 = smul.addr %s436, 4
        %s438 = scalar_lea.vmem [#allocation2], %s437
        %p439 = pneg %p49
        %p440 = pneg %p46
        %p441 = pneg %p70
        %p442 = pneg %p67
        %p443 = pneg %p91
        %p444 = pneg %p88
        %p445 = pneg %p112
        %p446 = pneg %p109
        %p447 = pneg %p133
        %p448 = pneg %p130
        %p449 = pneg %p154
        %p450 = pneg %p151
        %p451 = pneg %p175
        %p452 = pneg %p172
        %p453 = pneg %p196
        %p454 = pneg %p193
        %p455 = pneg %p217
        %p456 = pneg %p214
        %p457 = pneg %p238
        %p458 = pneg %p235
        %p459 = pneg %p259
        %p460 = pneg %p256
        %p461 = pneg %p285
        %p462 = pneg %p282
        %p463 = scmp.lt.s32.totalorder %s28, 1
        %s464 = scalar_select %p463, %s28, 1
        %s465 = smul.addr %s464, 8
        %s466 = scalar_lea.vmem %s11, %s465
        %p467 = scmp.lt.s32.totalorder %s28, 1
        %s468 = scalar_select %p467, %s28, 1
        %s469 = smul.addr %s468, 8
        %s470 = scalar_lea.vmem %s11, %s469
        %v472 = vld [vmem:[%s409] sm:$0xf]
        %v473 = vunpack.c.l.bf16 %v472
        %v474 = vmul.f32 %v473, %v473
        %475 = vadd.xlane.f32.xlu0 %v474
        %v476 = vpop.xlane.xlu0 %475
        %v477 = vrsqrt.pop %v476
        %v478 = vld [vmem:[#allocation4] sm:$0xff]
        %v479 = vld [vmem:[#allocation4 + $0x8] sm:$0xff]
        %v480 = vld [vmem:[#allocation4 + $0x10] sm:$0xff]
        %v481 = vld [vmem:[#allocation4 + $0x18] sm:$0xff]
        %v482 = vld [vmem:[#allocation4 + $0x20] sm:$0xff]
        %v483 = vld [vmem:[#allocation4 + $0x28] sm:$0xff]
        %v484 = vld [vmem:[#allocation4 + $0x30] sm:$0xff]
        %v485 = vld [vmem:[#allocation4 + $0x38] sm:$0xff]
        %v486 = vld [vmem:[#allocation4 + $0x40] sm:$0xff]
        %v487 = vld [vmem:[#allocation4 + $0x48] sm:$0xff]
        %v488 = vld [vmem:[#allocation4 + $0x50] sm:$0xff]
        %v489 = vld [vmem:[#allocation4 + $0x58] sm:$0xff]
        %v490 = vld [vmem:[#allocation4 + $0x60] sm:$0xff]
        %v491 = vld [vmem:[#allocation4 + $0x68] sm:$0xff]
        %v492 = vld [vmem:[#allocation4 + $0x70] sm:$0xff]
        %v493 = vld [vmem:[#allocation4 + $0x78] sm:$0xff]
        %v494 = vld [vmem:[#allocation4 + $0x80] sm:$0xff]
        %v495 = vld [vmem:[#allocation4 + $0x88] sm:$0xff]
        %v496 = vld [vmem:[#allocation4 + $0x90] sm:$0xff]
        %v497 = vld [vmem:[#allocation4 + $0x98] sm:$0xff]
        %v498 = vld [vmem:[#allocation4 + $0xa0] sm:$0xff]
        %v499 = vld [vmem:[#allocation4 + $0xa8] sm:$0xff]
        %v500 = vld [vmem:[#allocation4 + $0xb0] sm:$0xff]
        %v501 = vld [vmem:[#allocation4 + $0xb8] sm:$0xff]
        %v502 = vld [vmem:[#allocation4 + $0xc0] sm:$0xff]
        %v503 = vld [vmem:[#allocation4 + $0xc8] sm:$0xff]
        %v504 = vld [vmem:[#allocation4 + $0xd0] sm:$0xff]
        %v505 = vld [vmem:[#allocation4 + $0xd8] sm:$0xff]
        %v506 = vld [vmem:[#allocation4 + $0xe0] sm:$0xff]
        %v507 = vld [vmem:[#allocation4 + $0xe8] sm:$0xff]
        %v508 = vld [vmem:[#allocation4 + $0xf0] sm:$0xff]
        %v509 = vld [vmem:[#allocation4 + $0xf8] sm:$0xff]
        %v542 = vunpack.c.l.b16 %v478
        %v543 = vunpack.c.h.b16 %v478
        %v544 = vunpack.c.l.b16 %v479
        %v545 = vunpack.c.h.b16 %v479
        %v546 = vunpack.c.l.b16 %v480
        %v547 = vunpack.c.h.b16 %v480
        %v548 = vunpack.c.l.b16 %v481
        %v549 = vunpack.c.h.b16 %v481
        %v550 = vunpack.c.l.b16 %v482
        %v551 = vunpack.c.h.b16 %v482
        %v552 = vunpack.c.l.b16 %v483
        %v553 = vunpack.c.h.b16 %v483
        %v554 = vunpack.c.l.b16 %v484
        %v555 = vunpack.c.h.b16 %v484
        %v556 = vunpack.c.l.b16 %v485
        %v557 = vunpack.c.h.b16 %v485
        %v558 = vunpack.c.l.b16 %v486
        %v559 = vunpack.c.h.b16 %v486
        %v560 = vunpack.c.l.b16 %v487
        %v561 = vunpack.c.h.b16 %v487
        %v562 = vunpack.c.l.b16 %v488
        %v563 = vunpack.c.h.b16 %v488
        %v564 = vunpack.c.l.b16 %v489
        %v565 = vunpack.c.h.b16 %v489
        %v566 = vunpack.c.l.b16 %v490
        %v567 = vunpack.c.h.b16 %v490
        %v568 = vunpack.c.l.b16 %v491
        %v569 = vunpack.c.h.b16 %v491
        %v570 = vunpack.c.l.b16 %v492
        %v571 = vunpack.c.h.b16 %v492
        %v572 = vunpack.c.l.b16 %v493
        %v573 = vunpack.c.h.b16 %v493
        %v574 = vunpack.c.l.b16 %v494
        %v575 = vunpack.c.h.b16 %v494
        %v576 = vunpack.c.l.b16 %v495
        %v577 = vunpack.c.h.b16 %v495
        %v578 = vunpack.c.l.b16 %v496
        %v579 = vunpack.c.h.b16 %v496
        %v580 = vunpack.c.l.b16 %v497
        %v581 = vunpack.c.h.b16 %v497
        %v582 = vunpack.c.l.b16 %v498
        %v583 = vunpack.c.h.b16 %v498
        %v584 = vunpack.c.l.b16 %v499
        %v585 = vunpack.c.h.b16 %v499
        %v586 = vunpack.c.l.b16 %v500
        %v587 = vunpack.c.h.b16 %v500
        %v588 = vunpack.c.l.b16 %v501
        %v589 = vunpack.c.h.b16 %v501
        %v590 = vunpack.c.l.b16 %v502
        %v591 = vunpack.c.h.b16 %v502
        %v592 = vunpack.c.l.b16 %v503
        %v593 = vunpack.c.h.b16 %v503
        %v594 = vunpack.c.l.b16 %v504
        %v595 = vunpack.c.h.b16 %v504
        %v596 = vunpack.c.l.b16 %v505
        %v597 = vunpack.c.h.b16 %v505
        %v598 = vunpack.c.l.b16 %v506
        %v599 = vunpack.c.h.b16 %v506
        %v600 = vunpack.c.l.b16 %v507
        %v601 = vunpack.c.h.b16 %v507
        %v602 = vunpack.c.l.b16 %v508
        %v603 = vunpack.c.h.b16 %v508
        %v604 = vunpack.c.l.b16 %v509
        %v605 = vunpack.c.h.b16 %v509
        %v606 = vpack.c.b16 %v546, %v542
        %v607 = vpack.c.b16 %v547, %v543
        %v608 = vpack.c.b16 %v548, %v544
        %v609 = vpack.c.b16 %v549, %v545
        %v610 = vpack.c.b16 %v554, %v550
        %v611 = vpack.c.b16 %v555, %v551
        %v612 = vpack.c.b16 %v556, %v552
        %v613 = vpack.c.b16 %v557, %v553
        %v614 = vpack.c.b16 %v562, %v558
        %v615 = vpack.c.b16 %v563, %v559
        %v616 = vpack.c.b16 %v564, %v560
        %v617 = vpack.c.b16 %v565, %v561
        %v618 = vpack.c.b16 %v570, %v566
        %v619 = vpack.c.b16 %v571, %v567
        %v620 = vpack.c.b16 %v572, %v568
        %v621 = vpack.c.b16 %v573, %v569
        %v622 = vpack.c.b16 %v578, %v574
        %v623 = vpack.c.b16 %v579, %v575
        %v624 = vpack.c.b16 %v580, %v576
        %v625 = vpack.c.b16 %v581, %v577
        %v626 = vpack.c.b16 %v586, %v582
        %v627 = vpack.c.b16 %v587, %v583
        %v628 = vpack.c.b16 %v588, %v584
        %v629 = vpack.c.b16 %v589, %v585
        %v630 = vpack.c.b16 %v594, %v590
        %v631 = vpack.c.b16 %v595, %v591
        %v632 = vpack.c.b16 %v596, %v592
        %v633 = vpack.c.b16 %v597, %v593
        %v634 = vpack.c.b16 %v602, %v598
        %v635 = vpack.c.b16 %v603, %v599
        %v636 = vpack.c.b16 %v604, %v600
        %v637 = vpack.c.b16 %v605, %v601
        %670 = vmatprep.subr.bf16.mxu0 %v635
        %671 = vmatpush1.bf16.msra.mxu0 %v634
        %672 = vmatprep.subr.bf16.mxu0 %v631
        %673 = vmatpush1.bf16.msra.mxu0 %v630
        %674 = vmatprep.subr.bf16.mxu0 %v627
        %675 = vmatpush1.bf16.msra.mxu0 %v626
        %676 = vmatprep.subr.bf16.mxu0 %v623
        %677 = vmatpush1.bf16.msra.mxu0 %v622
        %678 = vmatprep.subr.bf16.mxu0 %v619
        %679 = vmatpush1.bf16.msra.mxu0 %v618
        %680 = vmatprep.subr.bf16.mxu0 %v615
        %681 = vmatpush1.bf16.msra.mxu0 %v614
        %682 = vmatprep.subr.bf16.mxu0 %v611
        %683 = vmatpush1.bf16.msra.mxu0 %v610
        %684 = vmatprep.subr.bf16.mxu0 %v607
        %685 = vmatpush1.bf16.msra.mxu0 %v606
        %686 = vmatprep.subr.bf16.mxu0 0
        %687 = vmatpush2.bf16.msra.mxu0 0
        %688 = vmatprep.subr.bf16.mxu0 0
        %689 = vmatpush2.bf16.msra.mxu0 0
        %690 = vmatprep.subr.bf16.mxu0 0
        %691 = vmatpush2.bf16.msra.mxu0 0
        %692 = vmatprep.subr.bf16.mxu0 0
        %693 = vmatpush2.bf16.msra.mxu0 0
        %694 = vmatprep.subr.bf16.mxu0 0
        %695 = vmatpush2.bf16.msra.mxu0 0
        %696 = vmatprep.subr.bf16.mxu0 0
        %697 = vmatpush2.bf16.msra.mxu0 0
        %698 = vmatprep.subr.bf16.mxu0 0
        %699 = vmatpush2.bf16.msra.mxu0 0
        %700 = vmatprep.subr.bf16.mxu0 0
        %701 = vmatpush2.bf16.msra.mxu0 0
        %702 = vmatprep.mubr.bf16.mxu0 0
        %703 = vmatmul.mubr.bf16.gmra.mxu0 %v472
        %v704 = vpop.f32.mrf.mxu0
        %v705 = vadd.f32 0.0, %v704
        %v706 = vpop.f32.mrf.mxu0
        %v707 = vadd.f32 0.0, %v706
        %v708 = vpop.f32.mrf.mxu0
        %v709 = vpop.f32.mrf.mxu0
        %710 = vdwg.mxu0
        %711 = vmatprep.subr.bf16.mxu0 %v637
        %712 = vmatpush1.bf16.msra.mxu0 %v636
        %713 = vmatprep.subr.bf16.mxu0 %v633
        %714 = vmatpush1.bf16.msra.mxu0 %v632
        %715 = vmatprep.subr.bf16.mxu0 %v629
        %716 = vmatpush1.bf16.msra.mxu0 %v628
        %717 = vmatprep.subr.bf16.mxu0 %v625
        %718 = vmatpush1.bf16.msra.mxu0 %v624
        %719 = vmatprep.subr.bf16.mxu0 %v621
        %720 = vmatpush1.bf16.msra.mxu0 %v620
        %721 = vmatprep.subr.bf16.mxu0 %v617
        %722 = vmatpush1.bf16.msra.mxu0 %v616
        %723 = vmatprep.subr.bf16.mxu0 %v613
        %724 = vmatpush1.bf16.msra.mxu0 %v612
        %725 = vmatprep.subr.bf16.mxu0 %v609
        %726 = vmatpush1.bf16.msra.mxu0 %v608
        %727 = vmatprep.subr.bf16.mxu0 0
        %728 = vmatpush2.bf16.msra.mxu0 0
        %729 = vmatprep.subr.bf16.mxu0 0
        %730 = vmatpush2.bf16.msra.mxu0 0
        %731 = vmatprep.subr.bf16.mxu0 0
        %732 = vmatpush2.bf16.msra.mxu0 0
        %733 = vmatprep.subr.bf16.mxu0 0
        %734 = vmatpush2.bf16.msra.mxu0 0
        %735 = vmatprep.subr.bf16.mxu0 0
        %736 = vmatpush2.bf16.msra.mxu0 0
        %737 = vmatprep.subr.bf16.mxu0 0
        %738 = vmatpush2.bf16.msra.mxu0 0
        %739 = vmatprep.subr.bf16.mxu0 0
        %740 = vmatpush2.bf16.msra.mxu0 0
        %741 = vmatprep.subr.bf16.mxu0 0
        %742 = vmatpush2.bf16.msra.mxu0 0
        %743 = vmatprep.mubr.bf16.mxu0 0
        %744 = vmatmul.mubr.bf16.gmra.mxu0 %v472
        %v745 = vpop.f32.mrf.mxu0
        %v746 = vadd.f32 0.0, %v745
        %v747 = vpop.f32.mrf.mxu0
        %v748 = vadd.f32 0.0, %v747
        %v749 = vpop.f32.mrf.mxu0
        %v750 = vpop.f32.mrf.mxu0
        %751 = vdwg.mxu0
        %v752 = vmul.f32 %v705, %v477
        %v753 = vmul.f32 %v707, %v477
        %v754 = vmul.f32 %v746, %v477
        %v755 = vmul.f32 %v748, %v477
        %v756 = vld [vmem:[#allocation6] sm:$0xf]
        %v758 = vlaneseq
        %v759 = vshrl.u32 %v758, 7
        %v760 = vsub.s32 0, %v759
        %v761 = vrot.slane %v756, %v760
        %v762 = vlaneseq
        %v763 = vshrl.u32 %v762, 7
        %v764 = vsub.s32 1, %v763
        %v765 = vrot.slane %v756, %v764
        %v766 = vlaneseq
        %v767 = vshrl.u32 %v766, 7
        %v768 = vsub.s32 2, %v767
        %v769 = vrot.slane %v756, %v768
        %v770 = vlaneseq
        %v771 = vshrl.u32 %v770, 7
        %v772 = vsub.s32 3, %v771
        %v773 = vrot.slane %v756, %v772
        %v778 = vadd.f32 %v752, %v761
        %v779 = vadd.f32 %v753, %v765
        %v780 = vadd.f32 %v754, %v769
        %v781 = vadd.f32 %v755, %v773
        %v782 = vld [vmem:[%s3] sm:$0xf]
        %v783 = vld [vmem:[#allocation7] sm:$0xf]
        %v784 = vadd.f32 %v778, %v779
        %v785 = vadd.f32 %v784, %v780
        %v786 = vadd.f32 %v785, %v781
        %787 = vadd.xlane.f32.xlu0 %v786
        %v788 = vpop.xlane.xlu0 %787
        %v789 = vmul.f32 %v788, 0.001953125
        %v790 = vmul.f32 %v778, %v778
        %v791 = vmul.f32 %v779, %v779
        %v792 = vmul.f32 %v780, %v780
        %v793 = vmul.f32 %v781, %v781
        %v794 = vadd.f32 %v790, %v791
        %v795 = vadd.f32 %v794, %v792
        %v796 = vadd.f32 %v795, %v793
        %797 = vadd.xlane.f32.xlu0 %v796
        %v798 = vpop.xlane.xlu0 %797
        %v799 = vmul.f32 %v798, 0.001953125
        %v800 = vmul.f32 %v789, %v789
        %v801 = vsub.f32 %v799, %v800
        %v802 = vsub.f32 %v778, %v789
        %v803 = vsub.f32 %v779, %v789
        %v804 = vsub.f32 %v780, %v789
        %v805 = vsub.f32 %v781, %v789
        %v806 = vadd.f32 %v801, 1e-05
        %v807 = vrsqrt.pop %v806
        %v808 = vmul.f32 %v802, %v807
        %v809 = vmul.f32 %v803, %v807
        %v810 = vmul.f32 %v804, %v807
        %v811 = vmul.f32 %v805, %v807
        %v813 = vlaneseq
        %v814 = vshrl.u32 %v813, 7
        %v815 = vsub.s32 0, %v814
        %v816 = vrot.slane %v782, %v815
        %v817 = vlaneseq
        %v818 = vshrl.u32 %v817, 7
        %v819 = vsub.s32 1, %v818
        %v820 = vrot.slane %v782, %v819
        %v821 = vlaneseq
        %v822 = vshrl.u32 %v821, 7
        %v823 = vsub.s32 2, %v822
        %v824 = vrot.slane %v782, %v823
        %v825 = vlaneseq
        %v826 = vshrl.u32 %v825, 7
        %v827 = vsub.s32 3, %v826
        %v828 = vrot.slane %v782, %v827
        %v833 = vmul.f32 %v808, %v816
        %v834 = vmul.f32 %v809, %v820
        %v835 = vmul.f32 %v810, %v824
        %v836 = vmul.f32 %v811, %v828
        %v838 = vlaneseq
        %v839 = vshrl.u32 %v838, 7
        %v840 = vsub.s32 0, %v839
        %v841 = vrot.slane %v783, %v840
        %v842 = vlaneseq
        %v843 = vshrl.u32 %v842, 7
        %v844 = vsub.s32 1, %v843
        %v845 = vrot.slane %v783, %v844
        %v846 = vlaneseq
        %v847 = vshrl.u32 %v846, 7
        %v848 = vsub.s32 2, %v847
        %v849 = vrot.slane %v783, %v848
        %v850 = vlaneseq
        %v851 = vshrl.u32 %v850, 7
        %v852 = vsub.s32 3, %v851
        %v853 = vrot.slane %v783, %v852
        %v858 = vadd.f32 %v833, %v841
        %v859 = vadd.f32 %v834, %v845
        %v860 = vadd.f32 %v835, %v849
        %v861 = vadd.f32 %v836, %v853
        %v862 = vmul.f32 %v858, 0.2
        %v863 = vmul.f32 %v859, 0.2
        %v864 = vmul.f32 %v860, 0.2
        %v865 = vmul.f32 %v861, 0.2
        %v866 = vmax.f32 %v858, %v862
        %v867 = vmax.f32 %v859, %v863
        %v868 = vmax.f32 %v860, %v864
        %v869 = vmax.f32 %v861, %v865
        %v870 = vmul.f32 %v866, %v866
        %v871 = vmul.f32 %v867, %v867
        %v872 = vmul.f32 %v868, %v868
        %v873 = vmul.f32 %v869, %v869
        %v874 = vadd.f32 %v870, %v871
        %v875 = vadd.f32 %v874, %v872
        %v876 = vadd.f32 %v875, %v873
        %877 = vadd.xlane.f32.xlu0 %v876
        %v878 = vpop.xlane.xlu0 %877
        %v879 = vrsqrt.pop %v878
        %v880 = vpack.c.bf16 %v866, %v866
        %v881 = vpack.c.bf16 %v867, %v867
        %v882 = vpack.c.bf16 %v868, %v868
        %v883 = vpack.c.bf16 %v869, %v869
        %v884 = vld [vmem:[#allocation9] sm:$0xff]
        %v885 = vld [vmem:[#allocation9 + $0x8] sm:$0xff]
        %v886 = vld [vmem:[#allocation9 + $0x10] sm:$0xff]
        %v887 = vld [vmem:[#allocation9 + $0x18] sm:$0xff]
        %v888 = vld [vmem:[#allocation9 + $0x20] sm:$0xff]
        %v889 = vld [vmem:[#allocation9 + $0x28] sm:$0xff]
        %v890 = vld [vmem:[#allocation9 + $0x30] sm:$0xff]
        %v891 = vld [vmem:[#allocation9 + $0x38] sm:$0xff]
        %v892 = vld [vmem:[#allocation9 + $0x40] sm:$0xff]
        %v893 = vld [vmem:[#allocation9 + $0x48] sm:$0xff]
        %v894 = vld [vmem:[#allocation9 + $0x50] sm:$0xff]
        %v895 = vld [vmem:[#allocation9 + $0x58] sm:$0xff]
        %v896 = vld [vmem:[#allocation9 + $0x60] sm:$0xff]
        %v897 = vld [vmem:[#allocation9 + $0x68] sm:$0xff]
        %v898 = vld [vmem:[#allocation9 + $0x70] sm:$0xff]
        %v899 = vld [vmem:[#allocation9 + $0x78] sm:$0xff]
        %v900 = vld [vmem:[#allocation9 + $0x80] sm:$0xff]
        %v901 = vld [vmem:[#allocation9 + $0x88] sm:$0xff]
        %v902 = vld [vmem:[#allocation9 + $0x90] sm:$0xff]
        %v903 = vld [vmem:[#allocation9 + $0x98] sm:$0xff]
        %v904 = vld [vmem:[#allocation9 + $0xa0] sm:$0xff]
        %v905 = vld [vmem:[#allocation9 + $0xa8] sm:$0xff]
        %v906 = vld [vmem:[#allocation9 + $0xb0] sm:$0xff]
        %v907 = vld [vmem:[#allocation9 + $0xb8] sm:$0xff]
        %v908 = vld [vmem:[#allocation9 + $0xc0] sm:$0xff]
        %v909 = vld [vmem:[#allocation9 + $0xc8] sm:$0xff]
        %v910 = vld [vmem:[#allocation9 + $0xd0] sm:$0xff]
        %v911 = vld [vmem:[#allocation9 + $0xd8] sm:$0xff]
        %v912 = vld [vmem:[#allocation9 + $0xe0] sm:$0xff]
        %v913 = vld [vmem:[#allocation9 + $0xe8] sm:$0xff]
        %v914 = vld [vmem:[#allocation9 + $0xf0] sm:$0xff]
        %v915 = vld [vmem:[#allocation9 + $0xf8] sm:$0xff]
        %v916 = vld [vmem:[#allocation9 + $0x100] sm:$0xff]
        %v917 = vld [vmem:[#allocation9 + $0x108] sm:$0xff]
        %v918 = vld [vmem:[#allocation9 + $0x110] sm:$0xff]
        %v919 = vld [vmem:[#allocation9 + $0x118] sm:$0xff]
        %v920 = vld [vmem:[#allocation9 + $0x120] sm:$0xff]
        %v921 = vld [vmem:[#allocation9 + $0x128] sm:$0xff]
        %v922 = vld [vmem:[#allocation9 + $0x130] sm:$0xff]
        %v923 = vld [vmem:[#allocation9 + $0x138] sm:$0xff]
        %v924 = vld [vmem:[#allocation9 + $0x140] sm:$0xff]
        %v925 = vld [vmem:[#allocation9 + $0x148] sm:$0xff]
        %v926 = vld [vmem:[#allocation9 + $0x150] sm:$0xff]
        %v927 = vld [vmem:[#allocation9 + $0x158] sm:$0xff]
        %v928 = vld [vmem:[#allocation9 + $0x160] sm:$0xff]
        %v929 = vld [vmem:[#allocation9 + $0x168] sm:$0xff]
        %v930 = vld [vmem:[#allocation9 + $0x170] sm:$0xff]
        %v931 = vld [vmem:[#allocation9 + $0x178] sm:$0xff]
        %v932 = vld [vmem:[#allocation9 + $0x180] sm:$0xff]
        %v933 = vld [vmem:[#allocation9 + $0x188] sm:$0xff]
        %v934 = vld [vmem:[#allocation9 + $0x190] sm:$0xff]
        %v935 = vld [vmem:[#allocation9 + $0x198] sm:$0xff]
        %v936 = vld [vmem:[#allocation9 + $0x1a0] sm:$0xff]
        %v937 = vld [vmem:[#allocation9 + $0x1a8] sm:$0xff]
        %v938 = vld [vmem:[#allocation9 + $0x1b0] sm:$0xff]
        %v939 = vld [vmem:[#allocation9 + $0x1b8] sm:$0xff]
        %v940 = vld [vmem:[#allocation9 + $0x1c0] sm:$0xff]
        %v941 = vld [vmem:[#allocation9 + $0x1c8] sm:$0xff]
        %v942 = vld [vmem:[#allocation9 + $0x1d0] sm:$0xff]
        %v943 = vld [vmem:[#allocation9 + $0x1d8] sm:$0xff]
        %v944 = vld [vmem:[#allocation9 + $0x1e0] sm:$0xff]
        %v945 = vld [vmem:[#allocation9 + $0x1e8] sm:$0xff]
        %v946 = vld [vmem:[#allocation9 + $0x1f0] sm:$0xff]
        %v947 = vld [vmem:[#allocation9 + $0x1f8] sm:$0xff]
        %v1012 = vunpack.c.l.b16 %v884
        %v1013 = vunpack.c.h.b16 %v884
        %v1014 = vunpack.c.l.b16 %v885
        %v1015 = vunpack.c.h.b16 %v885
        %v1016 = vunpack.c.l.b16 %v886
        %v1017 = vunpack.c.h.b16 %v886
        %v1018 = vunpack.c.l.b16 %v887
        %v1019 = vunpack.c.h.b16 %v887
        %v1020 = vunpack.c.l.b16 %v888
        %v1021 = vunpack.c.h.b16 %v888
        %v1022 = vunpack.c.l.b16 %v889
        %v1023 = vunpack.c.h.b16 %v889
        %v1024 = vunpack.c.l.b16 %v890
        %v1025 = vunpack.c.h.b16 %v890
        %v1026 = vunpack.c.l.b16 %v891
        %v1027 = vunpack.c.h.b16 %v891
        %v1028 = vunpack.c.l.b16 %v892
        %v1029 = vunpack.c.h.b16 %v892
        %v1030 = vunpack.c.l.b16 %v893
        %v1031 = vunpack.c.h.b16 %v893
        %v1032 = vunpack.c.l.b16 %v894
        %v1033 = vunpack.c.h.b16 %v894
        %v1034 = vunpack.c.l.b16 %v895
        %v1035 = vunpack.c.h.b16 %v895
        %v1036 = vunpack.c.l.b16 %v896
        %v1037 = vunpack.c.h.b16 %v896
        %v1038 = vunpack.c.l.b16 %v897
        %v1039 = vunpack.c.h.b16 %v897
        %v1040 = vunpack.c.l.b16 %v898
        %v1041 = vunpack.c.h.b16 %v898
        %v1042 = vunpack.c.l.b16 %v899
        %v1043 = vunpack.c.h.b16 %v899
        %v1044 = vunpack.c.l.b16 %v900
        %v1045 = vunpack.c.h.b16 %v900
        %v1046 = vunpack.c.l.b16 %v901
        %v1047 = vunpack.c.h.b16 %v901
        %v1048 = vunpack.c.l.b16 %v902
        %v1049 = vunpack.c.h.b16 %v902
        %v1050 = vunpack.c.l.b16 %v903
        %v1051 = vunpack.c.h.b16 %v903
        %v1052 = vunpack.c.l.b16 %v904
        %v1053 = vunpack.c.h.b16 %v904
        %v1054 = vunpack.c.l.b16 %v905
        %v1055 = vunpack.c.h.b16 %v905
        %v1056 = vunpack.c.l.b16 %v906
        %v1057 = vunpack.c.h.b16 %v906
        %v1058 = vunpack.c.l.b16 %v907
        %v1059 = vunpack.c.h.b16 %v907
        %v1060 = vunpack.c.l.b16 %v908
        %v1061 = vunpack.c.h.b16 %v908
        %v1062 = vunpack.c.l.b16 %v909
        %v1063 = vunpack.c.h.b16 %v909
        %v1064 = vunpack.c.l.b16 %v910
        %v1065 = vunpack.c.h.b16 %v910
        %v1066 = vunpack.c.l.b16 %v911
        %v1067 = vunpack.c.h.b16 %v911
        %v1068 = vunpack.c.l.b16 %v912
        %v1069 = vunpack.c.h.b16 %v912
        %v1070 = vunpack.c.l.b16 %v913
        %v1071 = vunpack.c.h.b16 %v913
        %v1072 = vunpack.c.l.b16 %v914
        %v1073 = vunpack.c.h.b16 %v914
        %v1074 = vunpack.c.l.b16 %v915
        %v1075 = vunpack.c.h.b16 %v915
        %v1076 = vunpack.c.l.b16 %v916
        %v1077 = vunpack.c.h.b16 %v916
        %v1078 = vunpack.c.l.b16 %v917
        %v1079 = vunpack.c.h.b16 %v917
        %v1080 = vunpack.c.l.b16 %v918
        %v1081 = vunpack.c.h.b16 %v918
        %v1082 = vunpack.c.l.b16 %v919
        %v1083 = vunpack.c.h.b16 %v919
        %v1084 = vunpack.c.l.b16 %v920
        %v1085 = vunpack.c.h.b16 %v920
        %v1086 = vunpack.c.l.b16 %v921
        %v1087 = vunpack.c.h.b16 %v921
        %v1088 = vunpack.c.l.b16 %v922
        %v1089 = vunpack.c.h.b16 %v922
        %v1090 = vunpack.c.l.b16 %v923
        %v1091 = vunpack.c.h.b16 %v923
        %v1092 = vunpack.c.l.b16 %v924
        %v1093 = vunpack.c.h.b16 %v924
        %v1094 = vunpack.c.l.b16 %v925
        %v1095 = vunpack.c.h.b16 %v925
        %v1096 = vunpack.c.l.b16 %v926
        %v1097 = vunpack.c.h.b16 %v926
        %v1098 = vunpack.c.l.b16 %v927
        %v1099 = vunpack.c.h.b16 %v927
        %v1100 = vunpack.c.l.b16 %v928
        %v1101 = vunpack.c.h.b16 %v928
        %v1102 = vunpack.c.l.b16 %v929
        %v1103 = vunpack.c.h.b16 %v929
        %v1104 = vunpack.c.l.b16 %v930
        %v1105 = vunpack.c.h.b16 %v930
        %v1106 = vunpack.c.l.b16 %v931
        %v1107 = vunpack.c.h.b16 %v931
        %v1108 = vunpack.c.l.b16 %v932
        %v1109 = vunpack.c.h.b16 %v932
        %v1110 = vunpack.c.l.b16 %v933
        %v1111 = vunpack.c.h.b16 %v933
        %v1112 = vunpack.c.l.b16 %v934
        %v1113 = vunpack.c.h.b16 %v934
        %v1114 = vunpack.c.l.b16 %v935
        %v1115 = vunpack.c.h.b16 %v935
        %v1116 = vunpack.c.l.b16 %v936
        %v1117 = vunpack.c.h.b16 %v936
        %v1118 = vunpack.c.l.b16 %v937
        %v1119 = vunpack.c.h.b16 %v937
        %v1120 = vunpack.c.l.b16 %v938
        %v1121 = vunpack.c.h.b16 %v938
        %v1122 = vunpack.c.l.b16 %v939
        %v1123 = vunpack.c.h.b16 %v939
        %v1124 = vunpack.c.l.b16 %v940
        %v1125 = vunpack.c.h.b16 %v940
        %v1126 = vunpack.c.l.b16 %v941
        %v1127 = vunpack.c.h.b16 %v941
        %v1128 = vunpack.c.l.b16 %v942
        %v1129 = vunpack.c.h.b16 %v942
        %v1130 = vunpack.c.l.b16 %v943
        %v1131 = vunpack.c.h.b16 %v943
        %v1132 = vunpack.c.l.b16 %v944
        %v1133 = vunpack.c.h.b16 %v944
        %v1134 = vunpack.c.l.b16 %v945
        %v1135 = vunpack.c.h.b16 %v945
        %v1136 = vunpack.c.l.b16 %v946
        %v1137 = vunpack.c.h.b16 %v946
        %v1138 = vunpack.c.l.b16 %v947
        %v1139 = vunpack.c.h.b16 %v947
        %v1140 = vpack.c.b16 %v1014, %v1012
        %v1141 = vpack.c.b16 %v1015, %v1013
        %v1142 = vpack.c.b16 %v1018, %v1016
        %v1143 = vpack.c.b16 %v1019, %v1017
        %v1144 = vpack.c.b16 %v1022, %v1020
        %v1145 = vpack.c.b16 %v1023, %v1021
        %v1146 = vpack.c.b16 %v1026, %v1024
        %v1147 = vpack.c.b16 %v1027, %v1025
        %v1148 = vpack.c.b16 %v1030, %v1028
        %v1149 = vpack.c.b16 %v1031, %v1029
        %v1150 = vpack.c.b16 %v1034, %v1032
        %v1151 = vpack.c.b16 %v1035, %v1033
        %v1152 = vpack.c.b16 %v1038, %v1036
        %v1153 = vpack.c.b16 %v1039, %v1037
        %v1154 = vpack.c.b16 %v1042, %v1040
        %v1155 = vpack.c.b16 %v1043, %v1041
        %v1156 = vpack.c.b16 %v1046, %v1044
        %v1157 = vpack.c.b16 %v1047, %v1045
        %v1158 = vpack.c.b16 %v1050, %v1048
        %v1159 = vpack.c.b16 %v1051, %v1049
        %v1160 = vpack.c.b16 %v1054, %v1052
        %v1161 = vpack.c.b16 %v1055, %v1053
        %v1162 = vpack.c.b16 %v1058, %v1056
        %v1163 = vpack.c.b16 %v1059, %v1057
        %v1164 = vpack.c.b16 %v1062, %v1060
        %v1165 = vpack.c.b16 %v1063, %v1061
        %v1166 = vpack.c.b16 %v1066, %v1064
        %v1167 = vpack.c.b16 %v1067, %v1065
        %v1168 = vpack.c.b16 %v1070, %v1068
        %v1169 = vpack.c.b16 %v1071, %v1069
        %v1170 = vpack.c.b16 %v1074, %v1072
        %v1171 = vpack.c.b16 %v1075, %v1073
        %v1172 = vpack.c.b16 %v1078, %v1076
        %v1173 = vpack.c.b16 %v1079, %v1077
        %v1174 = vpack.c.b16 %v1082, %v1080
        %v1175 = vpack.c.b16 %v1083, %v1081
        %v1176 = vpack.c.b16 %v1086, %v1084
        %v1177 = vpack.c.b16 %v1087, %v1085
        %v1178 = vpack.c.b16 %v1090, %v1088
        %v1179 = vpack.c.b16 %v1091, %v1089
        %v1180 = vpack.c.b16 %v1094, %v1092
        %v1181 = vpack.c.b16 %v1095, %v1093
        %v1182 = vpack.c.b16 %v1098, %v1096
        %v1183 = vpack.c.b16 %v1099, %v1097
        %v1184 = vpack.c.b16 %v1102, %v1100
        %v1185 = vpack.c.b16 %v1103, %v1101
        %v1186 = vpack.c.b16 %v1106, %v1104
        %v1187 = vpack.c.b16 %v1107, %v1105
        %v1188 = vpack.c.b16 %v1110, %v1108
        %v1189 = vpack.c.b16 %v1111, %v1109
        %v1190 = vpack.c.b16 %v1114, %v1112
        %v1191 = vpack.c.b16 %v1115, %v1113
        %v1192 = vpack.c.b16 %v1118, %v1116
        %v1193 = vpack.c.b16 %v1119, %v1117
        %v1194 = vpack.c.b16 %v1122, %v1120
        %v1195 = vpack.c.b16 %v1123, %v1121
        %v1196 = vpack.c.b16 %v1126, %v1124
        %v1197 = vpack.c.b16 %v1127, %v1125
        %v1198 = vpack.c.b16 %v1130, %v1128
        %v1199 = vpack.c.b16 %v1131, %v1129
        %v1200 = vpack.c.b16 %v1134, %v1132
        %v1201 = vpack.c.b16 %v1135, %v1133
        %v1202 = vpack.c.b16 %v1138, %v1136
        %v1203 = vpack.c.b16 %v1139, %v1137
        %1268 = vmatprep.subr.bf16.mxu0 %v1155
        %1269 = vmatpush1.bf16.msra.mxu0 %v1154
        %1270 = vmatprep.subr.bf16.mxu0 %v1153
        %1271 = vmatpush1.bf16.msra.mxu0 %v1152
        %1272 = vmatprep.subr.bf16.mxu0 %v1151
        %1273 = vmatpush1.bf16.msra.mxu0 %v1150
        %1274 = vmatprep.subr.bf16.mxu0 %v1149
        %1275 = vmatpush1.bf16.msra.mxu0 %v1148
        %1276 = vmatprep.subr.bf16.mxu0 %v1147
        %1277 = vmatpush1.bf16.msra.mxu0 %v1146
        %1278 = vmatprep.subr.bf16.mxu0 %v1145
        %1279 = vmatpush1.bf16.msra.mxu0 %v1144
        %1280 = vmatprep.subr.bf16.mxu0 %v1143
        %1281 = vmatpush1.bf16.msra.mxu0 %v1142
        %1282 = vmatprep.subr.bf16.mxu0 %v1141
        %1283 = vmatpush1.bf16.msra.mxu0 %v1140
        %1284 = vmatprep.subr.bf16.mxu0 %v1171
        %1285 = vmatpush2.bf16.msra.mxu0 %v1170
        %1286 = vmatprep.subr.bf16.mxu0 %v1169
        %1287 = vmatpush2.bf16.msra.mxu0 %v1168
        %1288 = vmatprep.subr.bf16.mxu0 %v1167
        %1289 = vmatpush2.bf16.msra.mxu0 %v1166
        %1290 = vmatprep.subr.bf16.mxu0 %v1165
        %1291 = vmatpush2.bf16.msra.mxu0 %v1164
        %1292 = vmatprep.subr.bf16.mxu0 %v1163
        %1293 = vmatpush2.bf16.msra.mxu0 %v1162
        %1294 = vmatprep.subr.bf16.mxu0 %v1161
        %1295 = vmatpush2.bf16.msra.mxu0 %v1160
        %1296 = vmatprep.subr.bf16.mxu0 %v1159
        %1297 = vmatpush2.bf16.msra.mxu0 %v1158
        %1298 = vmatprep.subr.bf16.mxu0 %v1157
        %1299 = vmatpush2.bf16.msra.mxu0 %v1156
        %1300 = vmatprep.mubr.bf16.mxu0 %v881
        %1301 = vmatmul.mubr.bf16.gmra.mxu0 %v880
        %v1302 = vpop.f32.mrf.mxu0
        %v1303 = vadd.f32 0.0, %v1302
        %v1304 = vpop.f32.mrf.mxu0
        %v1305 = vadd.f32 0.0, %v1304
        %v1306 = vpop.f32.mrf.mxu0
        %v1307 = vpop.f32.mrf.mxu0
        %1308 = vdwg.mxu0
        %1309 = vmatprep.subr.bf16.mxu0 %v1187
        %1310 = vmatpush1.bf16.msra.mxu0 %v1186
        %1311 = vmatprep.subr.bf16.mxu0 %v1185
        %1312 = vmatpush1.bf16.msra.mxu0 %v1184
        %1313 = vmatprep.subr.bf16.mxu0 %v1183
        %1314 = vmatpush1.bf16.msra.mxu0 %v1182
        %1315 = vmatprep.subr.bf16.mxu0 %v1181
        %1316 = vmatpush1.bf16.msra.mxu0 %v1180
        %1317 = vmatprep.subr.bf16.mxu0 %v1179
        %1318 = vmatpush1.bf16.msra.mxu0 %v1178
        %1319 = vmatprep.subr.bf16.mxu0 %v1177
        %1320 = vmatpush1.bf16.msra.mxu0 %v1176
        %1321 = vmatprep.subr.bf16.mxu0 %v1175
        %1322 = vmatpush1.bf16.msra.mxu0 %v1174
        %1323 = vmatprep.subr.bf16.mxu0 %v1173
        %1324 = vmatpush1.bf16.msra.mxu0 %v1172
        %1325 = vmatprep.subr.bf16.mxu0 %v1203
        %1326 = vmatpush2.bf16.msra.mxu0 %v1202
        %1327 = vmatprep.subr.bf16.mxu0 %v1201
        %1328 = vmatpush2.bf16.msra.mxu0 %v1200
        %1329 = vmatprep.subr.bf16.mxu0 %v1199
        %1330 = vmatpush2.bf16.msra.mxu0 %v1198
        %1331 = vmatprep.subr.bf16.mxu0 %v1197
        %1332 = vmatpush2.bf16.msra.mxu0 %v1196
        %1333 = vmatprep.subr.bf16.mxu0 %v1195
        %1334 = vmatpush2.bf16.msra.mxu0 %v1194
        %1335 = vmatprep.subr.bf16.mxu0 %v1193
        %1336 = vmatpush2.bf16.msra.mxu0 %v1192
        %1337 = vmatprep.subr.bf16.mxu0 %v1191
        %1338 = vmatpush2.bf16.msra.mxu0 %v1190
        %1339 = vmatprep.subr.bf16.mxu0 %v1189
        %1340 = vmatpush2.bf16.msra.mxu0 %v1188
        %1341 = vmatprep.mubr.bf16.mxu0 %v883
        %1342 = vmatmul.mubr.bf16.gmra.mxu0 %v882
        %v1343 = vpop.f32.mrf.mxu0
        %v1344 = vadd.f32 %v1303, %v1343
        %v1345 = vpop.f32.mrf.mxu0
        %v1346 = vadd.f32 %v1305, %v1345
        %v1347 = vpop.f32.mrf.mxu0
        %v1348 = vpop.f32.mrf.mxu0
        %1349 = vdwg.mxu0
        %v1350 = vmul.f32 %v1344, %v879
        %v1351 = vmul.f32 %v1346, %v879
        %v1352 = vld [vmem:[%s6] sm:$0x3]
        %v1354 = vlaneseq
        %v1355 = vshrl.u32 %v1354, 7
        %v1356 = vsub.s32 0, %v1355
        %v1357 = vrot.slane %v1352, %v1356
        %v1358 = vlaneseq
        %v1359 = vshrl.u32 %v1358, 7
        %v1360 = vsub.s32 1, %v1359
        %v1361 = vrot.slane %v1352, %v1360
        %v1364 = vadd.f32 %v1350, %v1357
        %v1365 = vadd.f32 %v1351, %v1361
        %v1366 = vld [vmem:[%s7] sm:$0x3]
        %v1367 = vld [vmem:[%s8] sm:$0x3]
        %v1368 = vadd.f32 %v1364, %v1365
        %1369 = vadd.xlane.f32.xlu0 %v1368
        %v1370 = vpop.xlane.xlu0 %1369
        %v1371 = vmul.f32 %v1370, 0.00390625
        %v1372 = vmul.f32 %v1364, %v1364
        %v1373 = vmul.f32 %v1365, %v1365
        %v1374 = vadd.f32 %v1372, %v1373
        %1375 = vadd.xlane.f32.xlu0 %v1374
        %v1376 = vpop.xlane.xlu0 %1375
        %v1377 = vmul.f32 %v1376, 0.00390625
        %v1378 = vmul.f32 %v1371, %v1371
        %v1379 = vsub.f32 %v1377, %v1378
        %v1380 = vsub.f32 %v1364, %v1371
        %v1381 = vsub.f32 %v1365, %v1371
        %v1382 = vadd.f32 %v1379, 1e-05
        %v1383 = vrsqrt.pop %v1382
        %v1384 = vmul.f32 %v1380, %v1383
        %v1385 = vmul.f32 %v1381, %v1383
        %v1387 = vlaneseq
        %v1388 = vshrl.u32 %v1387, 7
        %v1389 = vsub.s32 0, %v1388
        %v1390 = vrot.slane %v1366, %v1389
        %v1391 = vlaneseq
        %v1392 = vshrl.u32 %v1391, 7
        %v1393 = vsub.s32 1, %v1392
        %v1394 = vrot.slane %v1366, %v1393
        %v1397 = vmul.f32 %v1384, %v1390
        %v1398 = vmul.f32 %v1385, %v1394
        %v1400 = vlaneseq
        %v1401 = vshrl.u32 %v1400, 7
        %v1402 = vsub.s32 0, %v1401
        %v1403 = vrot.slane %v1367, %v1402
        %v1404 = vlaneseq
        %v1405 = vshrl.u32 %v1404, 7
        %v1406 = vsub.s32 1, %v1405
        %v1407 = vrot.slane %v1367, %v1406
        %v1410 = vadd.f32 %v1397, %v1403
        %v1411 = vadd.f32 %v1398, %v1407
        %v1412 = vmul.f32 %v1410, 0.2
        %v1413 = vmul.f32 %v1411, 0.2
        %v1414 = vmax.f32 %v1410, %v1412
        %v1415 = vmax.f32 %v1411, %v1413
        %v1416 = vpack.c.bf16 %v1414, %v1414
        %v1417 = vpack.c.bf16 %v1415, %v1415
        %v1418 = vld [vmem:[#allocation10] sm:$0xf]
        %v1419 = vld [vmem:[#allocation10 + $0x4] sm:$0xf]
        %v1420 = vld [vmem:[#allocation10 + $0x8] sm:$0xf]
        %v1421 = vld [vmem:[#allocation10 + $0xc] sm:$0xf]
        %v1422 = vld [vmem:[#allocation10 + $0x10] sm:$0xf]
        %v1423 = vld [vmem:[#allocation10 + $0x14] sm:$0xf]
        %v1424 = vld [vmem:[#allocation10 + $0x18] sm:$0xf]
        %v1425 = vld [vmem:[#allocation10 + $0x1c] sm:$0xf]
        %v1426 = vld [vmem:[#allocation10 + $0x20] sm:$0xf]
        %v1427 = vld [vmem:[#allocation10 + $0x24] sm:$0xf]
        %v1428 = vld [vmem:[#allocation10 + $0x28] sm:$0xf]
        %v1429 = vld [vmem:[#allocation10 + $0x2c] sm:$0xf]
        %v1430 = vld [vmem:[#allocation10 + $0x30] sm:$0xf]
        %v1431 = vld [vmem:[#allocation10 + $0x34] sm:$0xf]
        %v1432 = vld [vmem:[#allocation10 + $0x38] sm:$0xf]
        %v1433 = vld [vmem:[#allocation10 + $0x3c] sm:$0xf]
        %v1434 = vld [vmem:[#allocation10 + $0x40] sm:$0xf]
        %v1435 = vld [vmem:[#allocation10 + $0x44] sm:$0xf]
        %v1436 = vld [vmem:[#allocation10 + $0x48] sm:$0xf]
        %v1437 = vld [vmem:[#allocation10 + $0x4c] sm:$0xf]
        %v1438 = vld [vmem:[#allocation10 + $0x50] sm:$0xf]
        %v1439 = vld [vmem:[#allocation10 + $0x54] sm:$0xf]
        %v1440 = vld [vmem:[#allocation10 + $0x58] sm:$0xf]
        %v1441 = vld [vmem:[#allocation10 + $0x5c] sm:$0xf]
        %v1442 = vld [vmem:[#allocation10 + $0x60] sm:$0xf]
        %v1443 = vld [vmem:[#allocation10 + $0x64] sm:$0xf]
        %v1444 = vld [vmem:[#allocation10 + $0x68] sm:$0xf]
        %v1445 = vld [vmem:[#allocation10 + $0x6c] sm:$0xf]
        %v1446 = vld [vmem:[#allocation10 + $0x70] sm:$0xf]
        %v1447 = vld [vmem:[#allocation10 + $0x74] sm:$0xf]
        %v1448 = vld [vmem:[#allocation10 + $0x78] sm:$0xf]
        %v1449 = vld [vmem:[#allocation10 + $0x7c] sm:$0xf]
        %v1450 = vld [vmem:[%s10] sm:$0x1]
        %v1452 = vlaneseq
        %v1453 = vshrl.u32 %v1452, 7
        %v1454 = vsub.s32 0, %v1453
        %v1455 = vrot.slane %v1450, %v1454
        %v1489 = vunpack.c.l.b16 %v1418
        %v1490 = vunpack.c.l.b16 %v1419
        %v1491 = vunpack.c.l.b16 %v1420
        %v1492 = vunpack.c.l.b16 %v1421
        %v1493 = vunpack.c.l.b16 %v1422
        %v1494 = vunpack.c.l.b16 %v1423
        %v1495 = vunpack.c.l.b16 %v1424
        %v1496 = vunpack.c.l.b16 %v1425
        %v1497 = vunpack.c.l.b16 %v1426
        %v1498 = vunpack.c.l.b16 %v1427
        %v1499 = vunpack.c.l.b16 %v1428
        %v1500 = vunpack.c.l.b16 %v1429
        %v1501 = vunpack.c.l.b16 %v1430
        %v1502 = vunpack.c.l.b16 %v1431
        %v1503 = vunpack.c.l.b16 %v1432
        %v1504 = vunpack.c.l.b16 %v1433
        %v1505 = vunpack.c.l.b16 %v1434
        %v1506 = vunpack.c.l.b16 %v1435
        %v1507 = vunpack.c.l.b16 %v1436
        %v1508 = vunpack.c.l.b16 %v1437
        %v1509 = vunpack.c.l.b16 %v1438
        %v1510 = vunpack.c.l.b16 %v1439
        %v1511 = vunpack.c.l.b16 %v1440
        %v1512 = vunpack.c.l.b16 %v1441
        %v1513 = vunpack.c.l.b16 %v1442
        %v1514 = vunpack.c.l.b16 %v1443
        %v1515 = vunpack.c.l.b16 %v1444
        %v1516 = vunpack.c.l.b16 %v1445
        %v1517 = vunpack.c.l.b16 %v1446
        %v1518 = vunpack.c.l.b16 %v1447
        %v1519 = vunpack.c.l.b16 %v1448
        %v1520 = vunpack.c.l.b16 %v1449
        %v1521 = vpack.c.b16 %v1490, %v1489
        %v1522 = vpack.c.b16 %v1492, %v1491
        %v1523 = vpack.c.b16 %v1494, %v1493
        %v1524 = vpack.c.b16 %v1496, %v1495
        %v1525 = vpack.c.b16 %v1498, %v1497
        %v1526 = vpack.c.b16 %v1500, %v1499
        %v1527 = vpack.c.b16 %v1502, %v1501
        %v1528 = vpack.c.b16 %v1504, %v1503
        %v1529 = vpack.c.b16 %v1506, %v1505
        %v1530 = vpack.c.b16 %v1508, %v1507
        %v1531 = vpack.c.b16 %v1510, %v1509
        %v1532 = vpack.c.b16 %v1512, %v1511
        %v1533 = vpack.c.b16 %v1514, %v1513
        %v1534 = vpack.c.b16 %v1516, %v1515
        %v1535 = vpack.c.b16 %v1518, %v1517
        %v1536 = vpack.c.b16 %v1520, %v1519
        %1553 = vmatprep.subr.bf16.mxu0 0
        %1554 = vmatpush1.bf16.msra.mxu0 %v1528
        %1555 = vmatprep.subr.bf16.mxu0 0
        %1556 = vmatpush1.bf16.msra.mxu0 %v1527
        %1557 = vmatprep.subr.bf16.mxu0 0
        %1558 = vmatpush1.bf16.msra.mxu0 %v1526
        %1559 = vmatprep.subr.bf16.mxu0 0
        %1560 = vmatpush1.bf16.msra.mxu0 %v1525
        %1561 = vmatprep.subr.bf16.mxu0 0
        %1562 = vmatpush1.bf16.msra.mxu0 %v1524
        %1563 = vmatprep.subr.bf16.mxu0 0
        %1564 = vmatpush1.bf16.msra.mxu0 %v1523
        %1565 = vmatprep.subr.bf16.mxu0 0
        %1566 = vmatpush1.bf16.msra.mxu0 %v1522
        %1567 = vmatprep.subr.bf16.mxu0 0
        %1568 = vmatpush1.bf16.msra.mxu0 %v1521
        %1569 = vmatprep.subr.bf16.mxu0 0
        %1570 = vmatpush2.bf16.msra.mxu0 %v1536
        %1571 = vmatprep.subr.bf16.mxu0 0
        %1572 = vmatpush2.bf16.msra.mxu0 %v1535
        %1573 = vmatprep.subr.bf16.mxu0 0
        %1574 = vmatpush2.bf16.msra.mxu0 %v1534
        %1575 = vmatprep.subr.bf16.mxu0 0
        %1576 = vmatpush2.bf16.msra.mxu0 %v1533
        %1577 = vmatprep.subr.bf16.mxu0 0
        %1578 = vmatpush2.bf16.msra.mxu0 %v1532
        %1579 = vmatprep.subr.bf16.mxu0 0
        %1580 = vmatpush2.bf16.msra.mxu0 %v1531
        %1581 = vmatprep.subr.bf16.mxu0 0
        %1582 = vmatpush2.bf16.msra.mxu0 %v1530
        %1583 = vmatprep.subr.bf16.mxu0 0
        %1584 = vmatpush2.bf16.msra.mxu0 %v1529
        %1585 = vmatprep.mubr.bf16.mxu0 %v1417
        %1586 = vmatmul.mubr.bf16.gmra.mxu0 %v1416
        %v1587 = vpop.f32.mrf.mxu0
        %v1588 = vadd.f32 %v1455, %v1587
        %v1589 = vpop.f32.mrf.mxu0
        %v1590 = vpop.f32.mrf.mxu0
        %v1591 = vpop.f32.mrf.mxu0
        %1592 = vdwg.mxu0
        %vm1593 = vcmask 15360
        %1594 = vst.msk [vmem:[%s470] sm:$0xff] %vm1593, %v1588
        %p1595 = scmp.lt.s32.totalorder %s28, 1
        %s1596 = scalar_select %p1595, %s28, 1
        %s1597 = smul.addr %s1596, 8
        %s1598 = scalar_lea.vmem %s11, %s1597
        // Predicated region
        $region89: #{tpu_custom_call.1} parent=63 // pred_check
          %p1599 = pneg %p282
        $region90: #{tpu_custom_call.1} parent=63 // pred_check_branch
          %1601 = sbr.rel (%p1599) target = $region92
        $region91: #{tpu_custom_call.1} parent=63 // pred_region
          _
        $region92: #{tpu_custom_call.1} parent=63 // pred_fallthru
          _
      $region64: #{tpu_custom_call.1} parent=5 // pred_fallthru
        _
      %p1602 = scmp.le.s32.totalorder 2, %s23
      // Predicated region
      $region93: #{tpu_custom_call.1} parent=5 // pred_check
        %p1603 = pneg %p1602
      $region94: #{tpu_custom_call.1} parent=5 // pred_check_branch
        %1605 = sbr.rel (%p1603) target = $region96
      $region95: #{tpu_custom_call.1} parent=5 // pred_region
        %s1606 = ssub.s32 %s23, 2
        // Predicated region
        $region97: #{tpu_custom_call.1} parent=95 // pred_check
          %p1607 = pneg %p288
        $region98: #{tpu_custom_call.1} parent=95 // pred_check_branch
          %1609 = sbr.rel (%p1607) target = $region100
        $region99: #{tpu_custom_call.1} parent=95 // pred_region
          %p1610 = scmp.lt.s32.totalorder %s29, 1
          %s1611 = scalar_select %p1610, %s29, 1
          %s1612 = smul.addr %s1611, 8
          %s1613 = scalar_lea.vmem %s11, %s1612
        $region100: #{tpu_custom_call.1} parent=95 // pred_fallthru
          _
      $region96: #{tpu_custom_call.1} parent=5 // pred_fallthru
        _
    $region6: #{tpu_custom_call.1} parent=1 // loop_footer
      %s27 = sadd.s32 1, %s23
    $region7: #{tpu_custom_call.1} parent=1 // loop_footer_branch
      %22 = sbr.rel target = $region3
    $region8: #{tpu_custom_call.1} parent=1 // loop_exit
      _
    %1614 = vsyncpa [#allocation3], 1
    %s1615 = scalar_lea.sflag [#allocation3], 1
    %1616 = vsyncpa %s1615, 1
    %1617 = vsyncpa [#allocation5], 1
    %1618 = vsyncpa [#allocation8], 1
    %1619 = vsyncpa [#allocation11], 1

</llo_original>
